<compile_context>
chip_gen: v6e
topology: v6e:2x2x1
jax: 0.10.0
libtpu: 0.0.40
codegen_flags: <defaults>
</compile_context>

<pallas_src>
import math
import functools

import jax
import jax.numpy as jnp
import numpy as np
from jax.experimental import pallas as pl
from jax.experimental.pallas import tpu as pltpu

NUM_HEADS = 4
LN_EPS = 1e-5


def _layernorm(x, gamma, beta):
    """One-pass stats: independent sum / sum-of-squares, var = E[x^2] - mu^2."""
    inv_n = 1.0 / x.shape[-1]
    mu = jnp.sum(x, axis=-1, keepdims=True) * inv_n
    ex2 = jnp.sum(x * x, axis=-1, keepdims=True) * inv_n
    var = ex2 - mu * mu
    return (x - mu) * jax.lax.rsqrt(var + LN_EPS) * gamma + beta


def encoder_block_kernel(x_ref, w_ref, vec_ref, o_ref, cat_ref,
                         *, batch, seq, num_heads, ff_hidden):
    B, S, H, F = batch, seq, num_heads, ff_hidden
    BS, E = x_ref.shape
    d = E // H

    x = x_ref[...]                        # (B*S, E) f32 — whole batch, one slab
    vecs = vec_ref[...]                   # (8, 128) f32 packed bias / LN vectors

    bqkv = vecs[0:1, :3 * E]              # q-part pre-scaled by 1/sqrt(d)
    bo   = vecs[1:2, :E]
    g1   = vecs[2:3, :E]
    be1  = vecs[3:4, :E]
    b1   = vecs[4:5, :F]
    b2   = vecs[5:6, :E]
    g2   = vecs[6:7, :E]
    be2  = vecs[7:8, :E]

    # Unpack the single bf16 weight slab (static, lane-0-aligned sub-blocks).
    wqkv = w_ref[0:E, 0:3 * E]            # (E, 3E)
    wo   = w_ref[E:2 * E, 0:E]            # (E, E)
    w1   = w_ref[2 * E:3 * E, 0:F]        # (E, F)
    w2   = w_ref[3 * E:3 * E + F, 0:E]    # (F, E)

    x_bf = x.astype(jnp.bfloat16)

    # ---- Multi-head self-attention (bf16 MXU operands, f32 accumulate) ---
    qkv = jnp.dot(x_bf, wqkv, preferred_element_type=jnp.float32) + bqkv
    qkv3 = qkv.reshape(B, S, 3 * E)       # leading-dim split only (S = 8 tile)

    for h in range(H):                    # static unroll over heads
        qh = qkv3[:, :, h * d:(h + 1) * d].astype(jnp.bfloat16)
        kh = qkv3[:, :, E + h * d:E + (h + 1) * d].astype(jnp.bfloat16)
        vh = qkv3[:, :, 2 * E + h * d:2 * E + (h + 1) * d].astype(jnp.bfloat16)

        s = jnp.einsum("bqd,bkd->bqk", qh, kh,
                       preferred_element_type=jnp.float32)      # (B, S, S) f32
        s = s - jnp.max(s, axis=-1, keepdims=True)
        p = jnp.exp(s)
        p = p * pl.reciprocal(jnp.sum(p, axis=-1, keepdims=True), approx=True)
        oh = jnp.einsum("bqk,bkd->bqd", p.astype(jnp.bfloat16), vh,
                        preferred_element_type=jnp.float32)     # (B, S, d) f32

        # Write head output into the bf16 concat scratch (static lane slice).
        cat_ref[:, h * d:(h + 1) * d] = oh.reshape(BS, d).astype(jnp.bfloat16)

    # Single K=E out-projection over all heads (no serial K=d chain).
    attn = jnp.dot(cat_ref[...], wo, preferred_element_type=jnp.float32) + bo

    # residual + LayerNorm 1  (f32)
    y = _layernorm(x + attn, g1, be1)

    # ---- Feed-forward (bf16 MXU operands, f32 elementwise) ----------------
    h1 = jnp.dot(y.astype(jnp.bfloat16), w1,
                 preferred_element_type=jnp.float32) + b1
    h1 = jnp.maximum(h1, 0.0)
    h2 = jnp.dot(h1.astype(jnp.bfloat16), w2,
                 preferred_element_type=jnp.float32) + b2

    # residual + LayerNorm 2  (f32)
    o_ref[...] = _layernorm(y + h2, g2, be2)


def encoder_block(x, kparams):
    B, S, E = x.shape
    x2d = x.reshape(B * S, E)             # contiguous reshape; sublane-dense I/O

    kernel = functools.partial(encoder_block_kernel, batch=B, seq=S,
                               num_heads=NUM_HEADS, ff_hidden=kparams["ff"])
    vmem = pl.BlockSpec(memory_space=pltpu.MemorySpace.VMEM)

    out2d = pl.pallas_call(
        kernel,
        out_shape=jax.ShapeDtypeStruct((B * S, E), jnp.float32),
        in_specs=[vmem, vmem, vmem],
        out_specs=vmem,
        scratch_shapes=[pltpu.VMEM((B * S, E), jnp.bfloat16)],  # head concat buf
    )(x2d, kparams["wslab"], kparams["vecs"])
    return out2d.reshape(B, S, E)


def make_params(key, E, F):
    """Raw PyTorch-convention parameters (out, in) for the reference."""
    ks = jax.random.split(key, 12)
    std = 0.02
    return dict(
        in_proj_w=jax.random.normal(ks[0], (3 * E, E), jnp.float32) * std,
        in_proj_b=jax.random.normal(ks[1], (3 * E,), jnp.float32) * std,
        out_proj_w=jax.random.normal(ks[2], (E, E), jnp.float32) * std,
        out_proj_b=jax.random.normal(ks[3], (E,), jnp.float32) * std,
        w1=jax.random.normal(ks[4], (F, E), jnp.float32) * std,
        b1=jax.random.normal(ks[5], (F,), jnp.float32) * std,
        w2=jax.random.normal(ks[6], (E, F), jnp.float32) * std,
        b2=jax.random.normal(ks[7], (E,), jnp.float32) * std,
        ln1_g=1.0 + 0.1 * jax.random.normal(ks[8], (E,), jnp.float32),
        ln1_b=0.1 * jax.random.normal(ks[9], (E,), jnp.float32),
        ln2_g=1.0 + 0.1 * jax.random.normal(ks[10], (E,), jnp.float32),
        ln2_b=0.1 * jax.random.normal(ks[11], (E,), jnp.float32),
    )


def prepare_kernel_params(raw, num_heads=NUM_HEADS):
    """One-time host-side transforms: transpose, fold q-scale, pack slabs."""
    E = raw["out_proj_w"].shape[0]
    F = raw["w1"].shape[0]
    d = E // num_heads
    scale = 1.0 / math.sqrt(d)

    wqkv_t = np.asarray(raw["in_proj_w"], np.float32).T.copy()   # (E, 3E)
    wqkv_t[:, :E] *= scale                                       # fold 1/sqrt(d)
    bqkv = np.asarray(raw["in_proj_b"], np.float32).copy()
    bqkv[:E] *= scale

    wo_t = np.asarray(raw["out_proj_w"], np.float32).T           # (E, E)
    w1_t = np.asarray(raw["w1"], np.float32).T                   # (E, F)
    w2_t = np.asarray(raw["w2"], np.float32).T                   # (F, E)

    # Single bf16 weight slab, sub-blocks stacked along sublanes at lane 0.
    width = max(3 * E, F, E)
    wslab = np.zeros((3 * E + F, width), np.float32)
    wslab[0:E, 0:3 * E] = wqkv_t
    wslab[E:2 * E, 0:E] = wo_t
    wslab[2 * E:3 * E, 0:F] = w1_t
    wslab[3 * E:3 * E + F, 0:E] = w2_t

    # Single f32 slab for all bias / LayerNorm vectors.
    rows = [bqkv, raw["out_proj_b"], raw["ln1_g"], raw["ln1_b"],
            raw["b1"], raw["b2"], raw["ln2_g"], raw["ln2_b"]]
    vwidth = ((max(3 * E, F) + 127) // 128) * 128
    vecs = np.zeros((8, vwidth), np.float32)
    for i, r in enumerate(rows):
        r = np.asarray(r, np.float32)
        vecs[i, :r.shape[0]] = r

    return dict(
        wslab=jnp.asarray(wslab).astype(jnp.bfloat16),
        vecs=jnp.asarray(vecs),
        ff=int(F),
    )


def reference_encoder_block(x, raw):
    """Pure-JAX reference matching PyTorch eval-mode semantics (f32)."""
    B, S, E = x.shape
    H = NUM_HEADS
    d = E // H
    qkv = x @ raw["in_proj_w"].T + raw["in_proj_b"]
    q, k, v = qkv[..., :E], qkv[..., E:2 * E], qkv[..., 2 * E:]

    def split(t):  # (B, S, E) -> (B, H, S, d)
        return t.reshape(B, S, H, d).transpose(0, 2, 1, 3)

    qh, kh, vh = split(q), split(k), split(v)
    s = jnp.einsum("bhqd,bhkd->bhqk", qh, kh) / math.sqrt(d)
    p = jax.nn.softmax(s, axis=-1)
    o = jnp.einsum("bhqk,bhkd->bhqd", p, vh).transpose(0, 2, 1, 3).reshape(B, S, E)
    o = o @ raw["out_proj_w"].T + raw["out_proj_b"]

    def ln(t, g, b):
        mu = t.mean(-1, keepdims=True)
        var = ((t - mu) ** 2).mean(-1, keepdims=True)
        return (t - mu) / jnp.sqrt(var + LN_EPS) * g + b

    y = ln(x + o, raw["ln1_g"], raw["ln1_b"])
    h = jax.nn.relu(y @ raw["w1"].T + raw["b1"])
    h = h @ raw["w2"].T + raw["b2"]
    return ln(y + h, raw["ln2_g"], raw["ln2_b"])


if __name__ == "__main__":
    B, S, E, F = 2, 8, 32, 64   # embedding_size=32, ff_hidden_size=64, 4 heads
    key = jax.random.PRNGKey(0)
    kx, kp = jax.random.split(key)
    x = jax.random.normal(kx, (B, S, E), jnp.float32)

    raw = make_params(kp, E, F)
    kparams = prepare_kernel_params(raw)

    out = encoder_block(x, kparams)
    out = jax.block_until_ready(out)

    ref = reference_encoder_block(x, raw)
    # bf16 MXU operands + approx softmax reciprocal -> ~1e-2-class agreement
    # (elementwise / softmax / LayerNorm paths remain f32).
    np.testing.assert_allclose(np.asarray(out), np.asarray(ref),
                               rtol=1e-2, atol=1e-2)
    print("KERNEL_OK")
</pallas_src>

<mosaic_0001>
module attributes {stable_mosaic.version = 11 : i64} {
  func.func @encoder_block_kernel(%arg0: memref<16x32xf32, #tpu.memory_space<vmem>>, %arg1: memref<160x96xbf16, #tpu.memory_space<vmem>>, %arg2: memref<8x128xf32, #tpu.memory_space<vmem>>, %arg3: memref<16x32xf32, #tpu.memory_space<vmem>>, %arg4: memref<16x32xbf16, #tpu.memory_space<vmem>>) attributes {dimension_semantics = [], scalar_prefetch = 0 : i64, scratch_operands = 1 : i64, tpu.core_type = #tpu.core_type<tc>} {
    %c0 = arith.constant 0 : index
    %c0_0 = arith.constant 0 : index
    %0 = vector.load %arg0[%c0, %c0_0] : memref<16x32xf32, #tpu.memory_space<vmem>>, vector<16x32xf32>
    %c0_1 = arith.constant 0 : index
    %c0_2 = arith.constant 0 : index
    %1 = vector.load %arg2[%c0_1, %c0_2] : memref<8x128xf32, #tpu.memory_space<vmem>>, vector<8x128xf32>
    %2 = vector.extract_strided_slice %1 {offsets = [0, 0], sizes = [1, 96], strides = [1, 1]} : vector<8x128xf32> to vector<1x96xf32>
    %3 = vector.extract_strided_slice %1 {offsets = [1, 0], sizes = [1, 32], strides = [1, 1]} : vector<8x128xf32> to vector<1x32xf32>
    %4 = vector.extract_strided_slice %1 {offsets = [2, 0], sizes = [1, 32], strides = [1, 1]} : vector<8x128xf32> to vector<1x32xf32>
    %5 = vector.extract_strided_slice %1 {offsets = [3, 0], sizes = [1, 32], strides = [1, 1]} : vector<8x128xf32> to vector<1x32xf32>
    %6 = vector.extract_strided_slice %1 {offsets = [4, 0], sizes = [1, 64], strides = [1, 1]} : vector<8x128xf32> to vector<1x64xf32>
    %7 = vector.extract_strided_slice %1 {offsets = [5, 0], sizes = [1, 32], strides = [1, 1]} : vector<8x128xf32> to vector<1x32xf32>
    %8 = vector.extract_strided_slice %1 {offsets = [6, 0], sizes = [1, 32], strides = [1, 1]} : vector<8x128xf32> to vector<1x32xf32>
    %9 = vector.extract_strided_slice %1 {offsets = [7, 0], sizes = [1, 32], strides = [1, 1]} : vector<8x128xf32> to vector<1x32xf32>
    %c0_3 = arith.constant 0 : index
    %c0_4 = arith.constant 0 : index
    %10 = vector.load %arg1[%c0_3, %c0_4] : memref<160x96xbf16, #tpu.memory_space<vmem>>, vector<32x96xbf16>
    %c32 = arith.constant 32 : index
    %c0_5 = arith.constant 0 : index
    %11 = vector.load %arg1[%c32, %c0_5] : memref<160x96xbf16, #tpu.memory_space<vmem>>, vector<32x32xbf16>
    %c64 = arith.constant 64 : index
    %c0_6 = arith.constant 0 : index
    %12 = vector.load %arg1[%c64, %c0_6] : memref<160x96xbf16, #tpu.memory_space<vmem>>, vector<32x64xbf16>
    %c96 = arith.constant 96 : index
    %c0_7 = arith.constant 0 : index
    %13 = vector.load %arg1[%c96, %c0_7] : memref<160x96xbf16, #tpu.memory_space<vmem>>, vector<64x32xbf16>
    %14 = arith.truncf %0 : vector<16x32xf32> to vector<16x32xbf16>
    %cst = arith.constant dense<0.000000e+00> : vector<16x96xf32>
    %15 = tpu.matmul %14, %10, %cst {dimension_numbers = #tpu.dot_dimension_numbers<[1], [0], [0], [1], [0, 0, 1, 1], [], []>} : vector<16x32xbf16>, vector<32x96xbf16>, vector<16x96xf32> -> vector<16x96xf32>
    %16 = vector.broadcast %2 : vector<1x96xf32> to vector<16x96xf32>
    %17 = arith.addf %15, %16 : vector<16x96xf32>
    %18 = vector.shape_cast %17 : vector<16x96xf32> to vector<2x8x96xf32>
    %19 = vector.extract_strided_slice %18 {offsets = [0, 0, 0], sizes = [2, 8, 8], strides = [1, 1, 1]} : vector<2x8x96xf32> to vector<2x8x8xf32>
    %20 = arith.truncf %19 : vector<2x8x8xf32> to vector<2x8x8xbf16>
    %21 = vector.extract_strided_slice %18 {offsets = [0, 0, 32], sizes = [2, 8, 8], strides = [1, 1, 1]} : vector<2x8x96xf32> to vector<2x8x8xf32>
    %22 = arith.truncf %21 : vector<2x8x8xf32> to vector<2x8x8xbf16>
    %23 = vector.extract_strided_slice %18 {offsets = [0, 0, 64], sizes = [2, 8, 8], strides = [1, 1, 1]} : vector<2x8x96xf32> to vector<2x8x8xf32>
    %24 = arith.truncf %23 : vector<2x8x8xf32> to vector<2x8x8xbf16>
    "tpu.trace_start"() <{level = 10 : i32, message = "bqd,bkd->bqk"}> : () -> ()
    %cst_8 = arith.constant dense<0.000000e+00> : vector<2x8x8xf32>
    %25 = tpu.matmul %20, %22, %cst_8 {dimension_numbers = #tpu.dot_dimension_numbers<[2], [2], [1], [1], [0, 0, 0, 1, 1, 1], [0], [0]>} : vector<2x8x8xbf16>, vector<2x8x8xbf16>, vector<2x8x8xf32> -> vector<2x8x8xf32>
    "tpu.trace_stop"() : () -> ()
    %cst_9 = arith.constant dense<0xFF800000> : vector<2x8xf32>
    %26 = vector.multi_reduction <maximumf>, %25, %cst_9 [2] : vector<2x8x8xf32> to vector<2x8xf32>
    %27 = vector.shape_cast %26 : vector<2x8xf32> to vector<2x8x1xf32>
    %28 = vector.broadcast %27 : vector<2x8x1xf32> to vector<2x8x8xf32>
    %29 = arith.subf %25, %28 : vector<2x8x8xf32>
    %30 = math.exp %29 : vector<2x8x8xf32>
    %cst_10 = arith.constant dense<0.000000e+00> : vector<2x8xf32>
    %31 = vector.multi_reduction <add>, %30, %cst_10 [2] : vector<2x8x8xf32> to vector<2x8xf32>
    %32 = vector.shape_cast %31 : vector<2x8xf32> to vector<2x8x1xf32>
    %33 = tpu.reciprocal %32 {approx = true} : vector<2x8x1xf32> -> vector<2x8x1xf32>
    %34 = vector.broadcast %33 : vector<2x8x1xf32> to vector<2x8x8xf32>
    %35 = arith.mulf %30, %34 : vector<2x8x8xf32>
    %36 = arith.truncf %35 : vector<2x8x8xf32> to vector<2x8x8xbf16>
    "tpu.trace_start"() <{level = 10 : i32, message = "bqk,bkd->bqd"}> : () -> ()
    %cst_11 = arith.constant dense<0.000000e+00> : vector<2x8x8xf32>
    %37 = tpu.matmul %36, %24, %cst_11 {dimension_numbers = #tpu.dot_dimension_numbers<[2], [1], [1], [2], [0, 0, 0, 1, 1, 2], [0], [0]>} : vector<2x8x8xbf16>, vector<2x8x8xbf16>, vector<2x8x8xf32> -> vector<2x8x8xf32>
    "tpu.trace_stop"() : () -> ()
    %38 = vector.shape_cast %37 : vector<2x8x8xf32> to vector<16x8xf32>
    %39 = arith.truncf %38 : vector<16x8xf32> to vector<16x8xbf16>
    %c0_12 = arith.constant 0 : index
    %c0_13 = arith.constant 0 : index
    %40 = vector.load %arg4[%c0_12, %c0_13] : memref<16x32xbf16, #tpu.memory_space<vmem>>, vector<16x8xbf16>
    tpu.vector_store %arg4[%c0_12, %c0_13], %39 {strides = array<i32>} : memref<16x32xbf16, #tpu.memory_space<vmem>>, vector<16x8xbf16>,
    %41 = vector.extract_strided_slice %18 {offsets = [0, 0, 8], sizes = [2, 8, 8], strides = [1, 1, 1]} : vector<2x8x96xf32> to vector<2x8x8xf32>
    %42 = arith.truncf %41 : vector<2x8x8xf32> to vector<2x8x8xbf16>
    %43 = vector.extract_strided_slice %18 {offsets = [0, 0, 40], sizes = [2, 8, 8], strides = [1, 1, 1]} : vector<2x8x96xf32> to vector<2x8x8xf32>
    %44 = arith.truncf %43 : vector<2x8x8xf32> to vector<2x8x8xbf16>
    %45 = vector.extract_strided_slice %18 {offsets = [0, 0, 72], sizes = [2, 8, 8], strides = [1, 1, 1]} : vector<2x8x96xf32> to vector<2x8x8xf32>
    %46 = arith.truncf %45 : vector<2x8x8xf32> to vector<2x8x8xbf16>
    "tpu.trace_start"() <{level = 10 : i32, message = "bqd,bkd->bqk"}> : () -> ()
    %cst_14 = arith.constant dense<0.000000e+00> : vector<2x8x8xf32>
    %47 = tpu.matmul %42, %44, %cst_14 {dimension_numbers = #tpu.dot_dimension_numbers<[2], [2], [1], [1], [0, 0, 0, 1, 1, 1], [0], [0]>} : vector<2x8x8xbf16>, vector<2x8x8xbf16>, vector<2x8x8xf32> -> vector<2x8x8xf32>
    "tpu.trace_stop"() : () -> ()
    %cst_15 = arith.constant dense<0xFF800000> : vector<2x8xf32>
    %48 = vector.multi_reduction <maximumf>, %47, %cst_15 [2] : vector<2x8x8xf32> to vector<2x8xf32>
    %49 = vector.shape_cast %48 : vector<2x8xf32> to vector<2x8x1xf32>
    %50 = vector.broadcast %49 : vector<2x8x1xf32> to vector<2x8x8xf32>
    %51 = arith.subf %47, %50 : vector<2x8x8xf32>
    %52 = math.exp %51 : vector<2x8x8xf32>
    %cst_16 = arith.constant dense<0.000000e+00> : vector<2x8xf32>
    %53 = vector.multi_reduction <add>, %52, %cst_16 [2] : vector<2x8x8xf32> to vector<2x8xf32>
    %54 = vector.shape_cast %53 : vector<2x8xf32> to vector<2x8x1xf32>
    %55 = tpu.reciprocal %54 {approx = true} : vector<2x8x1xf32> -> vector<2x8x1xf32>
    %56 = vector.broadcast %55 : vector<2x8x1xf32> to vector<2x8x8xf32>
    %57 = arith.mulf %52, %56 : vector<2x8x8xf32>
    %58 = arith.truncf %57 : vector<2x8x8xf32> to vector<2x8x8xbf16>
    "tpu.trace_start"() <{level = 10 : i32, message = "bqk,bkd->bqd"}> : () -> ()
    %cst_17 = arith.constant dense<0.000000e+00> : vector<2x8x8xf32>
    %59 = tpu.matmul %58, %46, %cst_17 {dimension_numbers = #tpu.dot_dimension_numbers<[2], [1], [1], [2], [0, 0, 0, 1, 1, 2], [0], [0]>} : vector<2x8x8xbf16>, vector<2x8x8xbf16>, vector<2x8x8xf32> -> vector<2x8x8xf32>
    "tpu.trace_stop"() : () -> ()
    %60 = vector.shape_cast %59 : vector<2x8x8xf32> to vector<16x8xf32>
    %61 = arith.truncf %60 : vector<16x8xf32> to vector<16x8xbf16>
    %c0_18 = arith.constant 0 : index
    %c8 = arith.constant 8 : index
    %62 = vector.load %arg4[%c0_18, %c8] : memref<16x32xbf16, #tpu.memory_space<vmem>>, vector<16x8xbf16>
    tpu.vector_store %arg4[%c0_18, %c8], %61 {strides = array<i32>} : memref<16x32xbf16, #tpu.memory_space<vmem>>, vector<16x8xbf16>,
    %63 = vector.extract_strided_slice %18 {offsets = [0, 0, 16], sizes = [2, 8, 8], strides = [1, 1, 1]} : vector<2x8x96xf32> to vector<2x8x8xf32>
    %64 = arith.truncf %63 : vector<2x8x8xf32> to vector<2x8x8xbf16>
    %65 = vector.extract_strided_slice %18 {offsets = [0, 0, 48], sizes = [2, 8, 8], strides = [1, 1, 1]} : vector<2x8x96xf32> to vector<2x8x8xf32>
    %66 = arith.truncf %65 : vector<2x8x8xf32> to vector<2x8x8xbf16>
    %67 = vector.extract_strided_slice %18 {offsets = [0, 0, 80], sizes = [2, 8, 8], strides = [1, 1, 1]} : vector<2x8x96xf32> to vector<2x8x8xf32>
    %68 = arith.truncf %67 : vector<2x8x8xf32> to vector<2x8x8xbf16>
    "tpu.trace_start"() <{level = 10 : i32, message = "bqd,bkd->bqk"}> : () -> ()
    %cst_19 = arith.constant dense<0.000000e+00> : vector<2x8x8xf32>
    %69 = tpu.matmul %64, %66, %cst_19 {dimension_numbers = #tpu.dot_dimension_numbers<[2], [2], [1], [1], [0, 0, 0, 1, 1, 1], [0], [0]>} : vector<2x8x8xbf16>, vector<2x8x8xbf16>, vector<2x8x8xf32> -> vector<2x8x8xf32>
    "tpu.trace_stop"() : () -> ()
    %cst_20 = arith.constant dense<0xFF800000> : vector<2x8xf32>
    %70 = vector.multi_reduction <maximumf>, %69, %cst_20 [2] : vector<2x8x8xf32> to vector<2x8xf32>
    %71 = vector.shape_cast %70 : vector<2x8xf32> to vector<2x8x1xf32>
    %72 = vector.broadcast %71 : vector<2x8x1xf32> to vector<2x8x8xf32>
    %73 = arith.subf %69, %72 : vector<2x8x8xf32>
    %74 = math.exp %73 : vector<2x8x8xf32>
    %cst_21 = arith.constant dense<0.000000e+00> : vector<2x8xf32>
    %75 = vector.multi_reduction <add>, %74, %cst_21 [2] : vector<2x8x8xf32> to vector<2x8xf32>
    %76 = vector.shape_cast %75 : vector<2x8xf32> to vector<2x8x1xf32>
    %77 = tpu.reciprocal %76 {approx = true} : vector<2x8x1xf32> -> vector<2x8x1xf32>
    %78 = vector.broadcast %77 : vector<2x8x1xf32> to vector<2x8x8xf32>
    %79 = arith.mulf %74, %78 : vector<2x8x8xf32>
    %80 = arith.truncf %79 : vector<2x8x8xf32> to vector<2x8x8xbf16>
    "tpu.trace_start"() <{level = 10 : i32, message = "bqk,bkd->bqd"}> : () -> ()
    %cst_22 = arith.constant dense<0.000000e+00> : vector<2x8x8xf32>
    %81 = tpu.matmul %80, %68, %cst_22 {dimension_numbers = #tpu.dot_dimension_numbers<[2], [1], [1], [2], [0, 0, 0, 1, 1, 2], [0], [0]>} : vector<2x8x8xbf16>, vector<2x8x8xbf16>, vector<2x8x8xf32> -> vector<2x8x8xf32>
    "tpu.trace_stop"() : () -> ()
    %82 = vector.shape_cast %81 : vector<2x8x8xf32> to vector<16x8xf32>
    %83 = arith.truncf %82 : vector<16x8xf32> to vector<16x8xbf16>
    %c0_23 = arith.constant 0 : index
    %c16 = arith.constant 16 : index
    %84 = vector.load %arg4[%c0_23, %c16] : memref<16x32xbf16, #tpu.memory_space<vmem>>, vector<16x8xbf16>
    tpu.vector_store %arg4[%c0_23, %c16], %83 {strides = array<i32>} : memref<16x32xbf16, #tpu.memory_space<vmem>>, vector<16x8xbf16>,
    %85 = vector.extract_strided_slice %18 {offsets = [0, 0, 24], sizes = [2, 8, 8], strides = [1, 1, 1]} : vector<2x8x96xf32> to vector<2x8x8xf32>
    %86 = arith.truncf %85 : vector<2x8x8xf32> to vector<2x8x8xbf16>
    %87 = vector.extract_strided_slice %18 {offsets = [0, 0, 56], sizes = [2, 8, 8], strides = [1, 1, 1]} : vector<2x8x96xf32> to vector<2x8x8xf32>
    %88 = arith.truncf %87 : vector<2x8x8xf32> to vector<2x8x8xbf16>
    %89 = vector.extract_strided_slice %18 {offsets = [0, 0, 88], sizes = [2, 8, 8], strides = [1, 1, 1]} : vector<2x8x96xf32> to vector<2x8x8xf32>
    %90 = arith.truncf %89 : vector<2x8x8xf32> to vector<2x8x8xbf16>
    "tpu.trace_start"() <{level = 10 : i32, message = "bqd,bkd->bqk"}> : () -> ()
    %cst_24 = arith.constant dense<0.000000e+00> : vector<2x8x8xf32>
    %91 = tpu.matmul %86, %88, %cst_24 {dimension_numbers = #tpu.dot_dimension_numbers<[2], [2], [1], [1], [0, 0, 0, 1, 1, 1], [0], [0]>} : vector<2x8x8xbf16>, vector<2x8x8xbf16>, vector<2x8x8xf32> -> vector<2x8x8xf32>
    "tpu.trace_stop"() : () -> ()
    %cst_25 = arith.constant dense<0xFF800000> : vector<2x8xf32>
    %92 = vector.multi_reduction <maximumf>, %91, %cst_25 [2] : vector<2x8x8xf32> to vector<2x8xf32>
    %93 = vector.shape_cast %92 : vector<2x8xf32> to vector<2x8x1xf32>
    %94 = vector.broadcast %93 : vector<2x8x1xf32> to vector<2x8x8xf32>
    %95 = arith.subf %91, %94 : vector<2x8x8xf32>
    %96 = math.exp %95 : vector<2x8x8xf32>
    %cst_26 = arith.constant dense<0.000000e+00> : vector<2x8xf32>
    %97 = vector.multi_reduction <add>, %96, %cst_26 [2] : vector<2x8x8xf32> to vector<2x8xf32>
    %98 = vector.shape_cast %97 : vector<2x8xf32> to vector<2x8x1xf32>
    %99 = tpu.reciprocal %98 {approx = true} : vector<2x8x1xf32> -> vector<2x8x1xf32>
    %100 = vector.broadcast %99 : vector<2x8x1xf32> to vector<2x8x8xf32>
    %101 = arith.mulf %96, %100 : vector<2x8x8xf32>
    %102 = arith.truncf %101 : vector<2x8x8xf32> to vector<2x8x8xbf16>
    "tpu.trace_start"() <{level = 10 : i32, message = "bqk,bkd->bqd"}> : () -> ()
    %cst_27 = arith.constant dense<0.000000e+00> : vector<2x8x8xf32>
    %103 = tpu.matmul %102, %90, %cst_27 {dimension_numbers = #tpu.dot_dimension_numbers<[2], [1], [1], [2], [0, 0, 0, 1, 1, 2], [0], [0]>} : vector<2x8x8xbf16>, vector<2x8x8xbf16>, vector<2x8x8xf32> -> vector<2x8x8xf32>
    "tpu.trace_stop"() : () -> ()
    %104 = vector.shape_cast %103 : vector<2x8x8xf32> to vector<16x8xf32>
    %105 = arith.truncf %104 : vector<16x8xf32> to vector<16x8xbf16>
    %c0_28 = arith.constant 0 : index
    %c24 = arith.constant 24 : index
    %106 = vector.load %arg4[%c0_28, %c24] : memref<16x32xbf16, #tpu.memory_space<vmem>>, vector<16x8xbf16>
    tpu.vector_store %arg4[%c0_28, %c24], %105 {strides = array<i32>} : memref<16x32xbf16, #tpu.memory_space<vmem>>, vector<16x8xbf16>,
    %c0_29 = arith.constant 0 : index
    %c0_30 = arith.constant 0 : index
    %107 = vector.load %arg4[%c0_29, %c0_30] : memref<16x32xbf16, #tpu.memory_space<vmem>>, vector<16x32xbf16>
    %cst_31 = arith.constant dense<0.000000e+00> : vector<16x32xf32>
    %108 = tpu.matmul %107, %11, %cst_31 {dimension_numbers = #tpu.dot_dimension_numbers<[1], [0], [0], [1], [0, 0, 1, 1], [], []>} : vector<16x32xbf16>, vector<32x32xbf16>, vector<16x32xf32> -> vector<16x32xf32>
    %109 = vector.broadcast %3 : vector<1x32xf32> to vector<16x32xf32>
    %110 = arith.addf %108, %109 : vector<16x32xf32>
    %111 = arith.addf %0, %110 : vector<16x32xf32>
    %cst_32 = arith.constant dense<0.000000e+00> : vector<16xf32>
    %112 = vector.multi_reduction <add>, %111, %cst_32 [1] : vector<16x32xf32> to vector<16xf32>
    %113 = vector.shape_cast %112 : vector<16xf32> to vector<16x1xf32>
    %cst_33 = arith.constant 3.125000e-02 : f32
    %114 = vector.broadcast %cst_33 : f32 to vector<16x1xf32>
    %115 = arith.mulf %113, %114 : vector<16x1xf32>
    %116 = arith.mulf %111, %111 : vector<16x32xf32>
    %cst_34 = arith.constant dense<0.000000e+00> : vector<16xf32>
    %117 = vector.multi_reduction <add>, %116, %cst_34 [1] : vector<16x32xf32> to vector<16xf32>
    %118 = vector.shape_cast %117 : vector<16xf32> to vector<16x1xf32>
    %cst_35 = arith.constant 3.125000e-02 : f32
    %119 = vector.broadcast %cst_35 : f32 to vector<16x1xf32>
    %120 = arith.mulf %118, %119 : vector<16x1xf32>
    %121 = arith.mulf %115, %115 : vector<16x1xf32>
    %122 = arith.subf %120, %121 : vector<16x1xf32>
    %123 = vector.broadcast %115 : vector<16x1xf32> to vector<16x32xf32>
    %124 = arith.subf %111, %123 : vector<16x32xf32>
    %cst_36 = arith.constant 9.99999974E-6 : f32
    %125 = vector.broadcast %cst_36 : f32 to vector<16x1xf32>
    %126 = arith.addf %122, %125 : vector<16x1xf32>
    %127 = math.rsqrt %126 : vector<16x1xf32>
    %128 = vector.broadcast %127 : vector<16x1xf32> to vector<16x32xf32>
    %129 = arith.mulf %124, %128 : vector<16x32xf32>
    %130 = vector.broadcast %4 : vector<1x32xf32> to vector<16x32xf32>
    %131 = arith.mulf %129, %130 : vector<16x32xf32>
    %132 = vector.broadcast %5 : vector<1x32xf32> to vector<16x32xf32>
    %133 = arith.addf %131, %132 : vector<16x32xf32>
    %134 = arith.truncf %133 : vector<16x32xf32> to vector<16x32xbf16>
    %cst_37 = arith.constant dense<0.000000e+00> : vector<16x64xf32>
    %135 = tpu.matmul %134, %12, %cst_37 {dimension_numbers = #tpu.dot_dimension_numbers<[1], [0], [0], [1], [0, 0, 1, 1], [], []>} : vector<16x32xbf16>, vector<32x64xbf16>, vector<16x64xf32> -> vector<16x64xf32>
    %136 = vector.broadcast %6 : vector<1x64xf32> to vector<16x64xf32>
    %137 = arith.addf %135, %136 : vector<16x64xf32>
    %cst_38 = arith.constant 0.000000e+00 : f32
    %138 = vector.broadcast %cst_38 : f32 to vector<16x64xf32>
    %139 = arith.maximumf %137, %138 : vector<16x64xf32>
    %140 = arith.truncf %139 : vector<16x64xf32> to vector<16x64xbf16>
    %cst_39 = arith.constant dense<0.000000e+00> : vector<16x32xf32>
    %141 = tpu.matmul %140, %13, %cst_39 {dimension_numbers = #tpu.dot_dimension_numbers<[1], [0], [0], [1], [0, 0, 1, 1], [], []>} : vector<16x64xbf16>, vector<64x32xbf16>, vector<16x32xf32> -> vector<16x32xf32>
    %142 = vector.broadcast %7 : vector<1x32xf32> to vector<16x32xf32>
    %143 = arith.addf %141, %142 : vector<16x32xf32>
    %144 = arith.addf %133, %143 : vector<16x32xf32>
    %cst_40 = arith.constant dense<0.000000e+00> : vector<16xf32>
    %145 = vector.multi_reduction <add>, %144, %cst_40 [1] : vector<16x32xf32> to vector<16xf32>
    %146 = vector.shape_cast %145 : vector<16xf32> to vector<16x1xf32>
    %cst_41 = arith.constant 3.125000e-02 : f32
    %147 = vector.broadcast %cst_41 : f32 to vector<16x1xf32>
    %148 = arith.mulf %146, %147 : vector<16x1xf32>
    %149 = arith.mulf %144, %144 : vector<16x32xf32>
    %cst_42 = arith.constant dense<0.000000e+00> : vector<16xf32>
    %150 = vector.multi_reduction <add>, %149, %cst_42 [1] : vector<16x32xf32> to vector<16xf32>
    %151 = vector.shape_cast %150 : vector<16xf32> to vector<16x1xf32>
    %cst_43 = arith.constant 3.125000e-02 : f32
    %152 = vector.broadcast %cst_43 : f32 to vector<16x1xf32>
    %153 = arith.mulf %151, %152 : vector<16x1xf32>
    %154 = arith.mulf %148, %148 : vector<16x1xf32>
    %155 = arith.subf %153, %154 : vector<16x1xf32>
    %156 = vector.broadcast %148 : vector<16x1xf32> to vector<16x32xf32>
    %157 = arith.subf %144, %156 : vector<16x32xf32>
    %cst_44 = arith.constant 9.99999974E-6 : f32
    %158 = vector.broadcast %cst_44 : f32 to vector<16x1xf32>
    %159 = arith.addf %155, %158 : vector<16x1xf32>
    %160 = math.rsqrt %159 : vector<16x1xf32>
    %161 = vector.broadcast %160 : vector<16x1xf32> to vector<16x32xf32>
    %162 = arith.mulf %157, %161 : vector<16x32xf32>
    %163 = vector.broadcast %8 : vector<1x32xf32> to vector<16x32xf32>
    %164 = arith.mulf %162, %163 : vector<16x32xf32>
    %165 = vector.broadcast %9 : vector<1x32xf32> to vector<16x32xf32>
    %166 = arith.addf %164, %165 : vector<16x32xf32>
    %c0_45 = arith.constant 0 : index
    %c0_46 = arith.constant 0 : index
    %167 = vector.load %arg3[%c0_45, %c0_46] : memref<16x32xf32, #tpu.memory_space<vmem>>, vector<16x32xf32>
    tpu.vector_store %arg3[%c0_45, %c0_46], %166 {strides = array<i32>} : memref<16x32xf32, #tpu.memory_space<vmem>>, vector<16x32xf32>,
    return
  }
}

</mosaic_0001>

<llo_original>
// kernel: tpu_custom_call.1
$region0: #{tpu_custom_call.1}
  #allocation0 [shape = 'u32[]', space=smem, size = 0x4, offset = 0x4, fixed_abs, tag = 'smem constant byte address 0x4 - core index']
  #allocation1 [shape = 'u32[144,128]{1,0:T(1,128)}', space=vmem, size = 0x12000, scoped, tag = 'internal scratch']
  #allocation2 [shape = 'bf16[16,32]{1,0:T(8,128)(2,1)}', space=vmem, size = 0x1000, scoped, tag = 'scratch operand']
  %s0 = inlined_call_operand.hbm [shape: f32[16,32], index: 0, kind: input, shape index: {}]
  %s1 = inlined_call_operand.hbm [shape: bf16[160,96], index: 1, kind: input, shape index: {}]
  %s2 = inlined_call_operand.hbm [shape: f32[8,128], index: 2, kind: input, shape index: {}]
  %s3 = inlined_call_operand.hbm [shape: f32[16,32], index: 3, kind: output, shape index: {}]
  %s4 = sld [smem:[#allocation0]]
  $region34: #{tpu_custom_call.1} parent=0
    _
  %s6 = ssub.s32 1, %s4
  %s7 = scalar_select 0, %s6, %s4
  $region1: #{tpu_custom_call.1} parent=0
    #allocation3 [shape = 'u8[8192]{0}', space=vmem, size = 0x2000, scoped, tag = 'input window, operand 0, single buffered']
    #allocation4 [shape = 's32[1]{0}', space=sflag, size = 0x4, scoped, tag = 'scoped memory for tpu_custom_call.1']
    #allocation5 [shape = 's32[1]{0}', space=sflag, size = 0x4, scoped, tag = 'scoped memory for tpu_custom_call.1']
    #allocation6 [shape = 'u8[40960]{0}', space=vmem, size = 0xa000, scoped, tag = 'input window, operand 1, single buffered']
    #allocation7 [shape = 's32[1]{0}', space=sflag, size = 0x4, scoped, tag = 'scoped memory for tpu_custom_call.1']
    #allocation8 [shape = 'u8[4096]{0}', space=vmem, size = 0x1000, scoped, tag = 'input window, operand 2, single buffered']
    #allocation9 [shape = 'u8[8192]{0}', space=vmem, size = 0x2000, scoped, tag = 'output window, operand 0, single buffered']
    %8 = vsyncpa [#allocation4], 0
    %9 = vsyncpa [#allocation7], 0
    %10 = vsyncpa [#allocation5], 0
    // Predicated region
    $region2: #{tpu_custom_call.1} parent=1 // pred_check
      _
    $region3: #{tpu_custom_call.1} parent=1 // pred_check_branch
      %12 = sbr.rel (0) target = $region5
    $region4: #{tpu_custom_call.1} parent=1 // pred_region
      %s14 = ssub.s32 256, 256
      %15 = vsyncadd [#allocation4], %s14
      %s16 = sshll.u32 [#allocation3], 4
      %s17 = int_to_ptr.vmem [resolvable:$true] %s16
      %22 = dma.hbm_to_vmem [thread:$0]  %s0, 256, %s17, [#allocation4], 128, 128, 8
    $region5: #{tpu_custom_call.1} parent=1 // pred_fallthru
      _
    // Predicated region
    $region6: #{tpu_custom_call.1} parent=1 // pred_check
      _
    $region7: #{tpu_custom_call.1} parent=1 // pred_check_branch
      %24 = sbr.rel (0) target = $region9
    $region8: #{tpu_custom_call.1} parent=1 // pred_region
      %s26 = ssub.s32 1280, 1280
      %27 = vsyncadd [#allocation7], %s26
      %s28 = sshll.u32 [#allocation6], 4
      %s29 = int_to_ptr.vmem [resolvable:$true] %s28
      %34 = dma.hbm_to_vmem [thread:$0]  %s1, 1280, %s29, [#allocation7], 64, 64, 4
    $region9: #{tpu_custom_call.1} parent=1 // pred_fallthru
      _
    // Predicated region
    $region10: #{tpu_custom_call.1} parent=1 // pred_check
      _
    $region11: #{tpu_custom_call.1} parent=1 // pred_check_branch
      %36 = sbr.rel (0) target = $region13
    $region12: #{tpu_custom_call.1} parent=1 // pred_region
      %s38 = ssub.s32 128, 128
      %39 = vsyncadd [#allocation7], %s38
      %s41 = sshll.u32 [#allocation8], 4
      %s42 = int_to_ptr.vmem [resolvable:$true] %s41
      %44 = dma.hbm_to_vmem [thread:$0]  %s2, 128, %s42, [#allocation7]
    $region13: #{tpu_custom_call.1} parent=1 // pred_fallthru
      _
    // Predicated region
    $region14: #{tpu_custom_call.1} parent=1 // pred_check
      _
    $region15: #{tpu_custom_call.1} parent=1 // pred_check_branch
      %46 = sbr.rel (0) target = $region17
    $region16: #{tpu_custom_call.1} parent=1 // pred_region
      %47 = dma.done [#allocation4], 256
    $region17: #{tpu_custom_call.1} parent=1 // pred_fallthru
      _
    // Predicated region
    $region18: #{tpu_custom_call.1} parent=1 // pred_check
      _
    $region19: #{tpu_custom_call.1} parent=1 // pred_check_branch
      %49 = sbr.rel (0) target = $region21
    $region20: #{tpu_custom_call.1} parent=1 // pred_region
      %50 = dma.done [#allocation7], 1280
    $region21: #{tpu_custom_call.1} parent=1 // pred_fallthru
      _
    // Predicated region
    $region22: #{tpu_custom_call.1} parent=1 // pred_check
      _
    $region23: #{tpu_custom_call.1} parent=1 // pred_check_branch
      %52 = sbr.rel (0) target = $region25
    $region24: #{tpu_custom_call.1} parent=1 // pred_region
      %53 = dma.done [#allocation7], 128
    $region25: #{tpu_custom_call.1} parent=1 // pred_fallthru
      _
    %v55 = vld [vmem:[#allocation3] sm:$0xff]
    %v56 = vld [vmem:[#allocation3 + $0x8] sm:$0xff]
    %v57 = vld [vmem:[#allocation8] sm:$0xff]
    %v58 = vld [vmem:[#allocation6] sm:$0xf]
    %v59 = vld [vmem:[#allocation6 + $0x4] sm:$0xf]
    %v60 = vld [vmem:[#allocation6 + $0x8] sm:$0xf]
    %v61 = vld [vmem:[#allocation6 + $0xc] sm:$0xf]
    %v62 = vld [vmem:[#allocation6 + $0x10] sm:$0xf]
    %v63 = vld [vmem:[#allocation6 + $0x14] sm:$0xf]
    %v64 = vld [vmem:[#allocation6 + $0x18] sm:$0xf]
    %v65 = vld [vmem:[#allocation6 + $0x1c] sm:$0xf]
    %v66 = vld [vmem:[#allocation6 + $0x20] sm:$0xf]
    %v67 = vld [vmem:[#allocation6 + $0x24] sm:$0xf]
    %v68 = vld [vmem:[#allocation6 + $0x28] sm:$0xf]
    %v69 = vld [vmem:[#allocation6 + $0x2c] sm:$0xf]
    %v70 = vld [vmem:[#allocation6 + $0x30] sm:$0xf]
    %v71 = vld [vmem:[#allocation6 + $0x34] sm:$0xf]
    %v72 = vld [vmem:[#allocation6 + $0x38] sm:$0xf]
    %v73 = vld [vmem:[#allocation6 + $0x3c] sm:$0xf]
    %v74 = vld [vmem:[#allocation6 + $0x40] sm:$0xf]
    %v75 = vld [vmem:[#allocation6 + $0x44] sm:$0xf]
    %v76 = vld [vmem:[#allocation6 + $0x48] sm:$0xf]
    %v77 = vld [vmem:[#allocation6 + $0x4c] sm:$0xf]
    %v78 = vpack.c.bf16 %v56, %v55
    %v79 = vlaneseq
    %v80 = vshrl.u32 %v79, 7
    %v81 = vsub.s32 0, %v80
    %v82 = vrot.slane %v57, %v81
    %v87 = vunpack.c.l.b16 %v58
    %v88 = vunpack.c.l.b16 %v59
    %v89 = vunpack.c.l.b16 %v60
    %v90 = vunpack.c.l.b16 %v61
    %v91 = vpack.c.b16 %v88, %v87
    %v92 = vpack.c.b16 %v90, %v89
    %vm95 = vcmask 261120
    %v97 = vsel %vm95, %v78, 0
    %99 = vmatprep.subr.bf16.mxu0 0
    %100 = vmatpush1.bf16.msra.mxu0 0
    %101 = vmatprep.subr.bf16.mxu0 0
    %102 = vmatpush1.bf16.msra.mxu0 0
    %103 = vmatprep.subr.bf16.mxu0 0
    %104 = vmatpush1.bf16.msra.mxu0 0
    %105 = vmatprep.subr.bf16.mxu0 0
    %106 = vmatpush1.bf16.msra.mxu0 0
    %107 = vmatprep.subr.bf16.mxu0 0
    %108 = vmatpush1.bf16.msra.mxu0 0
    %109 = vmatprep.subr.bf16.mxu0 0
    %110 = vmatpush1.bf16.msra.mxu0 0
    %111 = vmatprep.subr.bf16.mxu0 0
    %112 = vmatpush1.bf16.msra.mxu0 %v92
    %113 = vmatprep.subr.bf16.mxu0 0
    %114 = vmatpush1.bf16.msra.mxu0 %v91
    %115 = vmatprep.subr.bf16.mxu0 0
    %116 = vmatpush2.bf16.msra.mxu0 0
    %117 = vmatprep.subr.bf16.mxu0 0
    %118 = vmatpush2.bf16.msra.mxu0 0
    %119 = vmatprep.subr.bf16.mxu0 0
    %120 = vmatpush2.bf16.msra.mxu0 0
    %121 = vmatprep.subr.bf16.mxu0 0
    %122 = vmatpush2.bf16.msra.mxu0 0
    %123 = vmatprep.subr.bf16.mxu0 0
    %124 = vmatpush2.bf16.msra.mxu0 0
    %125 = vmatprep.subr.bf16.mxu0 0
    %126 = vmatpush2.bf16.msra.mxu0 0
    %127 = vmatprep.subr.bf16.mxu0 0
    %128 = vmatpush2.bf16.msra.mxu0 0
    %129 = vmatprep.subr.bf16.mxu0 0
    %130 = vmatpush2.bf16.msra.mxu0 0
    %131 = vmatprep.mubr.bf16.mxu0 0
    %132 = vmatmul.mubr.bf16.gmra.mxu0 %v97
    %v133 = vpop.f32.mrf.mxu0
    %v134 = vadd.f32 %v82, %v133
    %v135 = vpop.f32.mrf.mxu0
    %v136 = vpop.f32.mrf.mxu0
    %v137 = vadd.f32 %v82, %v136
    %v138 = vpop.f32.mrf.mxu0
    %139 = vdwg.mxu0
    %v140 = vpack.c.bf16 %v134, %v134
    %v141 = vpack.c.bf16 %v137, %v137
    %143 = vrot.lane.b32.xlu0 %v140, 96
    %v144 = vpop.permute.xlu0 %143
    %vm145 = vcmask 64512
    %v147 = vsel %vm145, %v140, 0
    %v150 = vsel %vm145, %v144, 0
    %152 = vmatprep.subr.bf16.mxu0 0
    %153 = vmatpush1.bf16.xpose.msra.mxu0 0
    %154 = vmatprep.subr.bf16.mxu0 0
    %155 = vmatpush1.bf16.xpose.msra.mxu0 0
    %156 = vmatprep.subr.bf16.mxu0 0
    %157 = vmatpush1.bf16.xpose.msra.mxu0 0
    %158 = vmatprep.subr.bf16.mxu0 0
    %159 = vmatpush1.bf16.xpose.msra.mxu0 0
    %160 = vmatprep.subr.bf16.mxu0 0
    %161 = vmatpush1.bf16.xpose.msra.mxu0 0
    %162 = vmatprep.subr.bf16.mxu0 0
    %163 = vmatpush1.bf16.xpose.msra.mxu0 0
    %164 = vmatprep.subr.bf16.mxu0 0
    %165 = vmatpush1.bf16.xpose.msra.mxu0 0
    %166 = vmatprep.subr.bf16.mxu0 0
    %167 = vmatpush1.bf16.xpose.msra.mxu0 %v150
    %168 = vmatprep.subr.bf16.mxu0 0
    %169 = vmatpush2.bf16.xpose.msra.mxu0 0
    %170 = vmatprep.subr.bf16.mxu0 0
    %171 = vmatpush2.bf16.xpose.msra.mxu0 0
    %172 = vmatprep.subr.bf16.mxu0 0
    %173 = vmatpush2.bf16.xpose.msra.mxu0 0
    %174 = vmatprep.subr.bf16.mxu0 0
    %175 = vmatpush2.bf16.xpose.msra.mxu0 0
    %176 = vmatprep.subr.bf16.mxu0 0
    %177 = vmatpush2.bf16.xpose.msra.mxu0 0
    %178 = vmatprep.subr.bf16.mxu0 0
    %179 = vmatpush2.bf16.xpose.msra.mxu0 0
    %180 = vmatprep.subr.bf16.mxu0 0
    %181 = vmatpush2.bf16.xpose.msra.mxu0 0
    %182 = vmatprep.subr.bf16.mxu0 0
    %183 = vmatpush2.bf16.xpose.msra.mxu0 0
    %184 = vmatprep.mubr.bf16.mxu0 0
    %185 = vmatmul.mubr.bf16.gmra.mxu0 %v147
    %v186 = vpop.f32.mrf.mxu0
    %v187 = vadd.f32 0.0, %v186
    %v188 = vpop.f32.mrf.mxu0
    %v189 = vpop.f32.mrf.mxu0
    %v190 = vpop.f32.mrf.mxu0
    %191 = vdwg.mxu0
    %193 = vrot.lane.b32.xlu0 %v141, 96
    %v194 = vpop.permute.xlu0 %193
    %v196 = vsel %vm145, %v141, 0
    %v199 = vsel %vm145, %v194, 0
    %201 = vmatprep.subr.bf16.mxu0 0
    %202 = vmatpush1.bf16.xpose.msra.mxu0 0
    %203 = vmatprep.subr.bf16.mxu0 0
    %204 = vmatpush1.bf16.xpose.msra.mxu0 0
    %205 = vmatprep.subr.bf16.mxu0 0
    %206 = vmatpush1.bf16.xpose.msra.mxu0 0
    %207 = vmatprep.subr.bf16.mxu0 0
    %208 = vmatpush1.bf16.xpose.msra.mxu0 0
    %209 = vmatprep.subr.bf16.mxu0 0
    %210 = vmatpush1.bf16.xpose.msra.mxu0 0
    %211 = vmatprep.subr.bf16.mxu0 0
    %212 = vmatpush1.bf16.xpose.msra.mxu0 0
    %213 = vmatprep.subr.bf16.mxu0 0
    %214 = vmatpush1.bf16.xpose.msra.mxu0 0
    %215 = vmatprep.subr.bf16.mxu0 0
    %216 = vmatpush1.bf16.xpose.msra.mxu0 %v199
    %217 = vmatprep.subr.bf16.mxu0 0
    %218 = vmatpush2.bf16.xpose.msra.mxu0 0
    %219 = vmatprep.subr.bf16.mxu0 0
    %220 = vmatpush2.bf16.xpose.msra.mxu0 0
    %221 = vmatprep.subr.bf16.mxu0 0
    %222 = vmatpush2.bf16.xpose.msra.mxu0 0
    %223 = vmatprep.subr.bf16.mxu0 0
    %224 = vmatpush2.bf16.xpose.msra.mxu0 0
    %225 = vmatprep.subr.bf16.mxu0 0
    %226 = vmatpush2.bf16.xpose.msra.mxu0 0
    %227 = vmatprep.subr.bf16.mxu0 0
    %228 = vmatpush2.bf16.xpose.msra.mxu0 0
    %229 = vmatprep.subr.bf16.mxu0 0
    %230 = vmatpush2.bf16.xpose.msra.mxu0 0
    %231 = vmatprep.subr.bf16.mxu0 0
    %232 = vmatpush2.bf16.xpose.msra.mxu0 0
    %233 = vmatprep.mubr.bf16.mxu0 0
    %234 = vmatmul.mubr.bf16.gmra.mxu0 %v196
    %v235 = vpop.f32.mrf.mxu0
    %v236 = vadd.f32 0.0, %v235
    %v237 = vpop.f32.mrf.mxu0
    %v238 = vpop.f32.mrf.mxu0
    %v239 = vpop.f32.mrf.mxu0
    %240 = vdwg.mxu0
    %v241 = vsel %vm145, %v187, -inf
    %242 = vmax.xlane.f32.xlu0 %v241
    %v243 = vpop.xlane.xlu0 %242
    %v244 = vsel %vm145, %v236, -inf
    %245 = vmax.xlane.f32.xlu0 %v244
    %v246 = vpop.xlane.xlu0 %245
    %v247 = vsub.f32 %v187, %v243
    %v248 = vsub.f32 %v236, %v246
    %v249 = vmul.f32 %v247, 1.442695
    %v250 = vpow.pop %v249
    %v251 = vmul.f32 %v248, 1.442695
    %v252 = vpow.pop %v251
    %v253 = vsel %vm145, %v250, 0.0
    %254 = vadd.xlane.f32.xlu0 %v253
    %v255 = vpop.xlane.xlu0 %254
    %v256 = vsel %vm145, %v252, 0.0
    %257 = vadd.xlane.f32.xlu0 %v256
    %v258 = vpop.xlane.xlu0 %257
    %v259 = vrcp.pop %v255
    %v260 = vrcp.pop %v258
    %v261 = vmul.f32 %v250, %v259
    %v262 = vmul.f32 %v252, %v260
    %v263 = vpack.c.bf16 %v261, %v261
    %v264 = vpack.c.bf16 %v262, %v262
    %265 = vrot.lane.b32.xlu0 %v140, 64
    %v266 = vpop.permute.xlu0 %265
    %v268 = vsel %vm145, %v263, 0
    %vm270 = vcmask 1043456
    %v272 = vsel %vm270, %v266, 0
    %274 = vmatprep.subr.bf16.mxu0 0
    %275 = vmatpush1.bf16.msra.mxu0 0
    %276 = vmatprep.subr.bf16.mxu0 0
    %277 = vmatpush1.bf16.msra.mxu0 0
    %278 = vmatprep.subr.bf16.mxu0 0
    %279 = vmatpush1.bf16.msra.mxu0 0
    %280 = vmatprep.subr.bf16.mxu0 0
    %281 = vmatpush1.bf16.msra.mxu0 0
    %282 = vmatprep.subr.bf16.mxu0 0
    %283 = vmatpush1.bf16.msra.mxu0 0
    %284 = vmatprep.subr.bf16.mxu0 0
    %285 = vmatpush1.bf16.msra.mxu0 0
    %286 = vmatprep.subr.bf16.mxu0 0
    %287 = vmatpush1.bf16.msra.mxu0 0
    %288 = vmatprep.subr.bf16.mxu0 0
    %289 = vmatpush1.bf16.msra.mxu0 %v272
    %290 = vmatprep.subr.bf16.mxu0 0
    %291 = vmatpush2.bf16.msra.mxu0 0
    %292 = vmatprep.subr.bf16.mxu0 0
    %293 = vmatpush2.bf16.msra.mxu0 0
    %294 = vmatprep.subr.bf16.mxu0 0
    %295 = vmatpush2.bf16.msra.mxu0 0
    %296 = vmatprep.subr.bf16.mxu0 0
    %297 = vmatpush2.bf16.msra.mxu0 0
    %298 = vmatprep.subr.bf16.mxu0 0
    %299 = vmatpush2.bf16.msra.mxu0 0
    %300 = vmatprep.subr.bf16.mxu0 0
    %301 = vmatpush2.bf16.msra.mxu0 0
    %302 = vmatprep.subr.bf16.mxu0 0
    %303 = vmatpush2.bf16.msra.mxu0 0
    %304 = vmatprep.subr.bf16.mxu0 0
    %305 = vmatpush2.bf16.msra.mxu0 0
    %306 = vmatprep.mubr.bf16.mxu0 0
    %307 = vmatmul.mubr.bf16.gmra.mxu0 %v268
    %v308 = vpop.f32.mrf.mxu0
    %v309 = vadd.f32 0.0, %v308
    %v310 = vpop.f32.mrf.mxu0
    %v311 = vpop.f32.mrf.mxu0
    %v312 = vpop.f32.mrf.mxu0
    %313 = vdwg.mxu0
    %314 = vrot.lane.b32.xlu0 %v141, 64
    %v315 = vpop.permute.xlu0 %314
    %v317 = vsel %vm145, %v264, 0
    %v320 = vsel %vm270, %v315, 0
    %322 = vmatprep.subr.bf16.mxu0 0
    %323 = vmatpush1.bf16.msra.mxu0 0
    %324 = vmatprep.subr.bf16.mxu0 0
    %325 = vmatpush1.bf16.msra.mxu0 0
    %326 = vmatprep.subr.bf16.mxu0 0
    %327 = vmatpush1.bf16.msra.mxu0 0
    %328 = vmatprep.subr.bf16.mxu0 0
    %329 = vmatpush1.bf16.msra.mxu0 0
    %330 = vmatprep.subr.bf16.mxu0 0
    %331 = vmatpush1.bf16.msra.mxu0 0
    %332 = vmatprep.subr.bf16.mxu0 0
    %333 = vmatpush1.bf16.msra.mxu0 0
    %334 = vmatprep.subr.bf16.mxu0 0
    %335 = vmatpush1.bf16.msra.mxu0 0
    %336 = vmatprep.subr.bf16.mxu0 0
    %337 = vmatpush1.bf16.msra.mxu0 %v320
    %338 = vmatprep.subr.bf16.mxu0 0
    %339 = vmatpush2.bf16.msra.mxu0 0
    %340 = vmatprep.subr.bf16.mxu0 0
    %341 = vmatpush2.bf16.msra.mxu0 0
    %342 = vmatprep.subr.bf16.mxu0 0
    %343 = vmatpush2.bf16.msra.mxu0 0
    %344 = vmatprep.subr.bf16.mxu0 0
    %345 = vmatpush2.bf16.msra.mxu0 0
    %346 = vmatprep.subr.bf16.mxu0 0
    %347 = vmatpush2.bf16.msra.mxu0 0
    %348 = vmatprep.subr.bf16.mxu0 0
    %349 = vmatpush2.bf16.msra.mxu0 0
    %350 = vmatprep.subr.bf16.mxu0 0
    %351 = vmatpush2.bf16.msra.mxu0 0
    %352 = vmatprep.subr.bf16.mxu0 0
    %353 = vmatpush2.bf16.msra.mxu0 0
    %354 = vmatprep.mubr.bf16.mxu0 0
    %355 = vmatmul.mubr.bf16.gmra.mxu0 %v317
    %v356 = vpop.f32.mrf.mxu0
    %v357 = vadd.f32 0.0, %v356
    %v358 = vpop.f32.mrf.mxu0
    %v359 = vpop.f32.mrf.mxu0
    %v360 = vpop.f32.mrf.mxu0
    %361 = vdwg.mxu0
    %v362 = vpack.c.bf16 %v357, %v309
    %v364 = vunpack.c.l.b16 %v362
    %v365 = vunpack.c.h.b16 %v362
    %v366 = vpack.c.b16 %v364, %v364
    %v367 = vpack.c.b16 %v365, %v365
    %vm370 = vcmask 60416
    %371 = vst.msk [vmem:[#allocation2] sm:$0xf] %vm370, %v366
    %372 = vst.msk [vmem:[#allocation2 + $0x4] sm:$0xf] %vm370, %v367
    %373 = vrot.lane.b32.xlu0 %v140, 120
    %v374 = vpop.permute.xlu0 %373
    %375 = vrot.lane.b32.xlu0 %v140, 88
    %v376 = vpop.permute.xlu0 %375
    %v378 = vsel %vm145, %v374, 0
    %v381 = vsel %vm145, %v376, 0
    %383 = vmatprep.subr.bf16.mxu0 0
    %384 = vmatpush1.bf16.xpose.msra.mxu0 0
    %385 = vmatprep.subr.bf16.mxu0 0
    %386 = vmatpush1.bf16.xpose.msra.mxu0 0
    %387 = vmatprep.subr.bf16.mxu0 0
    %388 = vmatpush1.bf16.xpose.msra.mxu0 0
    %389 = vmatprep.subr.bf16.mxu0 0
    %390 = vmatpush1.bf16.xpose.msra.mxu0 0
    %391 = vmatprep.subr.bf16.mxu0 0
    %392 = vmatpush1.bf16.xpose.msra.mxu0 0
    %393 = vmatprep.subr.bf16.mxu0 0
    %394 = vmatpush1.bf16.xpose.msra.mxu0 0
    %395 = vmatprep.subr.bf16.mxu0 0
    %396 = vmatpush1.bf16.xpose.msra.mxu0 0
    %397 = vmatprep.subr.bf16.mxu0 0
    %398 = vmatpush1.bf16.xpose.msra.mxu0 %v381
    %399 = vmatprep.subr.bf16.mxu0 0
    %400 = vmatpush2.bf16.xpose.msra.mxu0 0
    %401 = vmatprep.subr.bf16.mxu0 0
    %402 = vmatpush2.bf16.xpose.msra.mxu0 0
    %403 = vmatprep.subr.bf16.mxu0 0
    %404 = vmatpush2.bf16.xpose.msra.mxu0 0
    %405 = vmatprep.subr.bf16.mxu0 0
    %406 = vmatpush2.bf16.xpose.msra.mxu0 0
    %407 = vmatprep.subr.bf16.mxu0 0
    %408 = vmatpush2.bf16.xpose.msra.mxu0 0
    %409 = vmatprep.subr.bf16.mxu0 0
    %410 = vmatpush2.bf16.xpose.msra.mxu0 0
    %411 = vmatprep.subr.bf16.mxu0 0
    %412 = vmatpush2.bf16.xpose.msra.mxu0 0
    %413 = vmatprep.subr.bf16.mxu0 0
    %414 = vmatpush2.bf16.xpose.msra.mxu0 0
    %415 = vmatprep.mubr.bf16.mxu0 0
    %416 = vmatmul.mubr.bf16.gmra.mxu0 %v378
    %v417 = vpop.f32.mrf.mxu0
    %v418 = vadd.f32 0.0, %v417
    %v419 = vpop.f32.mrf.mxu0
    %v420 = vpop.f32.mrf.mxu0
    %v421 = vpop.f32.mrf.mxu0
    %422 = vdwg.mxu0
    %423 = vrot.lane.b32.xlu0 %v141, 120
    %v424 = vpop.permute.xlu0 %423
    %425 = vrot.lane.b32.xlu0 %v141, 88
    %v426 = vpop.permute.xlu0 %425
    %v428 = vsel %vm145, %v424, 0
    %v431 = vsel %vm145, %v426, 0
    %433 = vmatprep.subr.bf16.mxu0 0
    %434 = vmatpush1.bf16.xpose.msra.mxu0 0
    %435 = vmatprep.subr.bf16.mxu0 0
    %436 = vmatpush1.bf16.xpose.msra.mxu0 0
    %437 = vmatprep.subr.bf16.mxu0 0
    %438 = vmatpush1.bf16.xpose.msra.mxu0 0
    %439 = vmatprep.subr.bf16.mxu0 0
    %440 = vmatpush1.bf16.xpose.msra.mxu0 0
    %441 = vmatprep.subr.bf16.mxu0 0
    %442 = vmatpush1.bf16.xpose.msra.mxu0 0
    %443 = vmatprep.subr.bf16.mxu0 0
    %444 = vmatpush1.bf16.xpose.msra.mxu0 0
    %445 = vmatprep.subr.bf16.mxu0 0
    %446 = vmatpush1.bf16.xpose.msra.mxu0 0
    %447 = vmatprep.subr.bf16.mxu0 0
    %448 = vmatpush1.bf16.xpose.msra.mxu0 %v431
    %449 = vmatprep.subr.bf16.mxu0 0
    %450 = vmatpush2.bf16.xpose.msra.mxu0 0
    %451 = vmatprep.subr.bf16.mxu0 0
    %452 = vmatpush2.bf16.xpose.msra.mxu0 0
    %453 = vmatprep.subr.bf16.mxu0 0
    %454 = vmatpush2.bf16.xpose.msra.mxu0 0
    %455 = vmatprep.subr.bf16.mxu0 0
    %456 = vmatpush2.bf16.xpose.msra.mxu0 0
    %457 = vmatprep.subr.bf16.mxu0 0
    %458 = vmatpush2.bf16.xpose.msra.mxu0 0
    %459 = vmatprep.subr.bf16.mxu0 0
    %460 = vmatpush2.bf16.xpose.msra.mxu0 0
    %461 = vmatprep.subr.bf16.mxu0 0
    %462 = vmatpush2.bf16.xpose.msra.mxu0 0
    %463 = vmatprep.subr.bf16.mxu0 0
    %464 = vmatpush2.bf16.xpose.msra.mxu0 0
    %465 = vmatprep.mubr.bf16.mxu0 0
    %466 = vmatmul.mubr.bf16.gmra.mxu0 %v428
    %v467 = vpop.f32.mrf.mxu0
    %v468 = vadd.f32 0.0, %v467
    %v469 = vpop.f32.mrf.mxu0
    %v470 = vpop.f32.mrf.mxu0
    %v471 = vpop.f32.mrf.mxu0
    %472 = vdwg.mxu0
    %v473 = vsel %vm145, %v418, -inf
    %474 = vmax.xlane.f32.xlu0 %v473
    %v475 = vpop.xlane.xlu0 %474
    %v476 = vsel %vm145, %v468, -inf
    %477 = vmax.xlane.f32.xlu0 %v476
    %v478 = vpop.xlane.xlu0 %477
    %v479 = vsub.f32 %v418, %v475
    %v480 = vsub.f32 %v468, %v478
    %v481 = vmul.f32 %v479, 1.442695
    %v482 = vpow.pop %v481
    %v483 = vmul.f32 %v480, 1.442695
    %v484 = vpow.pop %v483
    %v485 = vsel %vm145, %v482, 0.0
    %486 = vadd.xlane.f32.xlu0 %v485
    %v487 = vpop.xlane.xlu0 %486
    %v488 = vsel %vm145, %v484, 0.0
    %489 = vadd.xlane.f32.xlu0 %v488
    %v490 = vpop.xlane.xlu0 %489
    %v491 = vrcp.pop %v487
    %v492 = vrcp.pop %v490
    %v493 = vmul.f32 %v482, %v491
    %v494 = vmul.f32 %v484, %v492
    %v495 = vpack.c.bf16 %v493, %v493
    %v496 = vpack.c.bf16 %v494, %v494
    %497 = vrot.lane.b32.xlu0 %v140, 56
    %v498 = vpop.permute.xlu0 %497
    %v500 = vsel %vm145, %v495, 0
    %v503 = vsel %vm270, %v498, 0
    %505 = vmatprep.subr.bf16.mxu0 0
    %506 = vmatpush1.bf16.msra.mxu0 0
    %507 = vmatprep.subr.bf16.mxu0 0
    %508 = vmatpush1.bf16.msra.mxu0 0
    %509 = vmatprep.subr.bf16.mxu0 0
    %510 = vmatpush1.bf16.msra.mxu0 0
    %511 = vmatprep.subr.bf16.mxu0 0
    %512 = vmatpush1.bf16.msra.mxu0 0
    %513 = vmatprep.subr.bf16.mxu0 0
    %514 = vmatpush1.bf16.msra.mxu0 0
    %515 = vmatprep.subr.bf16.mxu0 0
    %516 = vmatpush1.bf16.msra.mxu0 0
    %517 = vmatprep.subr.bf16.mxu0 0
    %518 = vmatpush1.bf16.msra.mxu0 0
    %519 = vmatprep.subr.bf16.mxu0 0
    %520 = vmatpush1.bf16.msra.mxu0 %v503
    %521 = vmatprep.subr.bf16.mxu0 0
    %522 = vmatpush2.bf16.msra.mxu0 0
    %523 = vmatprep.subr.bf16.mxu0 0
    %524 = vmatpush2.bf16.msra.mxu0 0
    %525 = vmatprep.subr.bf16.mxu0 0
    %526 = vmatpush2.bf16.msra.mxu0 0
    %527 = vmatprep.subr.bf16.mxu0 0
    %528 = vmatpush2.bf16.msra.mxu0 0
    %529 = vmatprep.subr.bf16.mxu0 0
    %530 = vmatpush2.bf16.msra.mxu0 0
    %531 = vmatprep.subr.bf16.mxu0 0
    %532 = vmatpush2.bf16.msra.mxu0 0
    %533 = vmatprep.subr.bf16.mxu0 0
    %534 = vmatpush2.bf16.msra.mxu0 0
    %535 = vmatprep.subr.bf16.mxu0 0
    %536 = vmatpush2.bf16.msra.mxu0 0
    %537 = vmatprep.mubr.bf16.mxu0 0
    %538 = vmatmul.mubr.bf16.gmra.mxu0 %v500
    %v539 = vpop.f32.mrf.mxu0
    %v540 = vadd.f32 0.0, %v539
    %v541 = vpop.f32.mrf.mxu0
    %v542 = vpop.f32.mrf.mxu0
    %v543 = vpop.f32.mrf.mxu0
    %544 = vdwg.mxu0
    %545 = vrot.lane.b32.xlu0 %v141, 56
    %v546 = vpop.permute.xlu0 %545
    %v548 = vsel %vm145, %v496, 0
    %v551 = vsel %vm270, %v546, 0
    %553 = vmatprep.subr.bf16.mxu0 0
    %554 = vmatpush1.bf16.msra.mxu0 0
    %555 = vmatprep.subr.bf16.mxu0 0
    %556 = vmatpush1.bf16.msra.mxu0 0
    %557 = vmatprep.subr.bf16.mxu0 0
    %558 = vmatpush1.bf16.msra.mxu0 0
    %559 = vmatprep.subr.bf16.mxu0 0
    %560 = vmatpush1.bf16.msra.mxu0 0
    %561 = vmatprep.subr.bf16.mxu0 0
    %562 = vmatpush1.bf16.msra.mxu0 0
    %563 = vmatprep.subr.bf16.mxu0 0
    %564 = vmatpush1.bf16.msra.mxu0 0
    %565 = vmatprep.subr.bf16.mxu0 0
    %566 = vmatpush1.bf16.msra.mxu0 0
    %567 = vmatprep.subr.bf16.mxu0 0
    %568 = vmatpush1.bf16.msra.mxu0 %v551
    %569 = vmatprep.subr.bf16.mxu0 0
    %570 = vmatpush2.bf16.msra.mxu0 0
    %571 = vmatprep.subr.bf16.mxu0 0
    %572 = vmatpush2.bf16.msra.mxu0 0
    %573 = vmatprep.subr.bf16.mxu0 0
    %574 = vmatpush2.bf16.msra.mxu0 0
    %575 = vmatprep.subr.bf16.mxu0 0
    %576 = vmatpush2.bf16.msra.mxu0 0
    %577 = vmatprep.subr.bf16.mxu0 0
    %578 = vmatpush2.bf16.msra.mxu0 0
    %579 = vmatprep.subr.bf16.mxu0 0
    %580 = vmatpush2.bf16.msra.mxu0 0
    %581 = vmatprep.subr.bf16.mxu0 0
    %582 = vmatpush2.bf16.msra.mxu0 0
    %583 = vmatprep.subr.bf16.mxu0 0
    %584 = vmatpush2.bf16.msra.mxu0 0
    %585 = vmatprep.mubr.bf16.mxu0 0
    %586 = vmatmul.mubr.bf16.gmra.mxu0 %v548
    %v587 = vpop.f32.mrf.mxu0
    %v588 = vadd.f32 0.0, %v587
    %v589 = vpop.f32.mrf.mxu0
    %v590 = vpop.f32.mrf.mxu0
    %v591 = vpop.f32.mrf.mxu0
    %592 = vdwg.mxu0
    %v593 = vpack.c.bf16 %v588, %v540
    %v595 = vunpack.c.l.b16 %v593
    %v596 = vunpack.c.h.b16 %v593
    %v597 = vpack.c.b16 %v595, %v595
    %v598 = vpack.c.b16 %v596, %v596
    %599 = vrot.lane.b32.xlu0 %v597, 8
    %v600 = vpop.permute.xlu0 %599
    %601 = vrot.lane.b32.xlu0 %v598, 8
    %v602 = vpop.permute.xlu0 %601
    %vm605 = vcmask 126016
    %606 = vst.msk [vmem:[#allocation2] sm:$0xf] %vm605, %v600
    %607 = vst.msk [vmem:[#allocation2 + $0x4] sm:$0xf] %vm605, %v602
    %608 = vrot.lane.b32.xlu0 %v140, 112
    %v609 = vpop.permute.xlu0 %608
    %610 = vrot.lane.b32.xlu0 %v140, 80
    %v611 = vpop.permute.xlu0 %610
    %v613 = vsel %vm145, %v609, 0
    %v616 = vsel %vm145, %v611, 0
    %618 = vmatprep.subr.bf16.mxu0 0
    %619 = vmatpush1.bf16.xpose.msra.mxu0 0
    %620 = vmatprep.subr.bf16.mxu0 0
    %621 = vmatpush1.bf16.xpose.msra.mxu0 0
    %622 = vmatprep.subr.bf16.mxu0 0
    %623 = vmatpush1.bf16.xpose.msra.mxu0 0
    %624 = vmatprep.subr.bf16.mxu0 0
    %625 = vmatpush1.bf16.xpose.msra.mxu0 0
    %626 = vmatprep.subr.bf16.mxu0 0
    %627 = vmatpush1.bf16.xpose.msra.mxu0 0
    %628 = vmatprep.subr.bf16.mxu0 0
    %629 = vmatpush1.bf16.xpose.msra.mxu0 0
    %630 = vmatprep.subr.bf16.mxu0 0
    %631 = vmatpush1.bf16.xpose.msra.mxu0 0
    %632 = vmatprep.subr.bf16.mxu0 0
    %633 = vmatpush1.bf16.xpose.msra.mxu0 %v616
    %634 = vmatprep.subr.bf16.mxu0 0
    %635 = vmatpush2.bf16.xpose.msra.mxu0 0
    %636 = vmatprep.subr.bf16.mxu0 0
    %637 = vmatpush2.bf16.xpose.msra.mxu0 0
    %638 = vmatprep.subr.bf16.mxu0 0
    %639 = vmatpush2.bf16.xpose.msra.mxu0 0
    %640 = vmatprep.subr.bf16.mxu0 0
    %641 = vmatpush2.bf16.xpose.msra.mxu0 0
    %642 = vmatprep.subr.bf16.mxu0 0
    %643 = vmatpush2.bf16.xpose.msra.mxu0 0
    %644 = vmatprep.subr.bf16.mxu0 0
    %645 = vmatpush2.bf16.xpose.msra.mxu0 0
    %646 = vmatprep.subr.bf16.mxu0 0
    %647 = vmatpush2.bf16.xpose.msra.mxu0 0
    %648 = vmatprep.subr.bf16.mxu0 0
    %649 = vmatpush2.bf16.xpose.msra.mxu0 0
    %650 = vmatprep.mubr.bf16.mxu0 0
    %651 = vmatmul.mubr.bf16.gmra.mxu0 %v613
    %v652 = vpop.f32.mrf.mxu0
    %v653 = vadd.f32 0.0, %v652
    %v654 = vpop.f32.mrf.mxu0
    %v655 = vpop.f32.mrf.mxu0
    %v656 = vpop.f32.mrf.mxu0
    %657 = vdwg.mxu0
    %658 = vrot.lane.b32.xlu0 %v141, 112
    %v659 = vpop.permute.xlu0 %658
    %660 = vrot.lane.b32.xlu0 %v141, 80
    %v661 = vpop.permute.xlu0 %660
    %v663 = vsel %vm145, %v659, 0
    %v666 = vsel %vm145, %v661, 0
    %668 = vmatprep.subr.bf16.mxu0 0
    %669 = vmatpush1.bf16.xpose.msra.mxu0 0
    %670 = vmatprep.subr.bf16.mxu0 0
    %671 = vmatpush1.bf16.xpose.msra.mxu0 0
    %672 = vmatprep.subr.bf16.mxu0 0
    %673 = vmatpush1.bf16.xpose.msra.mxu0 0
    %674 = vmatprep.subr.bf16.mxu0 0
    %675 = vmatpush1.bf16.xpose.msra.mxu0 0
    %676 = vmatprep.subr.bf16.mxu0 0
    %677 = vmatpush1.bf16.xpose.msra.mxu0 0
    %678 = vmatprep.subr.bf16.mxu0 0
    %679 = vmatpush1.bf16.xpose.msra.mxu0 0
    %680 = vmatprep.subr.bf16.mxu0 0
    %681 = vmatpush1.bf16.xpose.msra.mxu0 0
    %682 = vmatprep.subr.bf16.mxu0 0
    %683 = vmatpush1.bf16.xpose.msra.mxu0 %v666
    %684 = vmatprep.subr.bf16.mxu0 0
    %685 = vmatpush2.bf16.xpose.msra.mxu0 0
    %686 = vmatprep.subr.bf16.mxu0 0
    %687 = vmatpush2.bf16.xpose.msra.mxu0 0
    %688 = vmatprep.subr.bf16.mxu0 0
    %689 = vmatpush2.bf16.xpose.msra.mxu0 0
    %690 = vmatprep.subr.bf16.mxu0 0
    %691 = vmatpush2.bf16.xpose.msra.mxu0 0
    %692 = vmatprep.subr.bf16.mxu0 0
    %693 = vmatpush2.bf16.xpose.msra.mxu0 0
    %694 = vmatprep.subr.bf16.mxu0 0
    %695 = vmatpush2.bf16.xpose.msra.mxu0 0
    %696 = vmatprep.subr.bf16.mxu0 0
    %697 = vmatpush2.bf16.xpose.msra.mxu0 0
    %698 = vmatprep.subr.bf16.mxu0 0
    %699 = vmatpush2.bf16.xpose.msra.mxu0 0
    %700 = vmatprep.mubr.bf16.mxu0 0
    %701 = vmatmul.mubr.bf16.gmra.mxu0 %v663
    %v702 = vpop.f32.mrf.mxu0
    %v703 = vadd.f32 0.0, %v702
    %v704 = vpop.f32.mrf.mxu0
    %v705 = vpop.f32.mrf.mxu0
    %v706 = vpop.f32.mrf.mxu0
    %707 = vdwg.mxu0
    %v708 = vsel %vm145, %v653, -inf
    %709 = vmax.xlane.f32.xlu0 %v708
    %v710 = vpop.xlane.xlu0 %709
    %v711 = vsel %vm145, %v703, -inf
    %712 = vmax.xlane.f32.xlu0 %v711
    %v713 = vpop.xlane.xlu0 %712
    %v714 = vsub.f32 %v653, %v710
    %v715 = vsub.f32 %v703, %v713
    %v716 = vmul.f32 %v714, 1.442695
    %v717 = vpow.pop %v716
    %v718 = vmul.f32 %v715, 1.442695
    %v719 = vpow.pop %v718
    %v720 = vsel %vm145, %v717, 0.0
    %721 = vadd.xlane.f32.xlu0 %v720
    %v722 = vpop.xlane.xlu0 %721
    %v723 = vsel %vm145, %v719, 0.0
    %724 = vadd.xlane.f32.xlu0 %v723
    %v725 = vpop.xlane.xlu0 %724
    %v726 = vrcp.pop %v722
    %v727 = vrcp.pop %v725
    %v728 = vmul.f32 %v717, %v726
    %v729 = vmul.f32 %v719, %v727
    %v730 = vpack.c.bf16 %v728, %v728
    %v731 = vpack.c.bf16 %v729, %v729
    %732 = vrot.lane.b32.xlu0 %v140, 48
    %v733 = vpop.permute.xlu0 %732
    %v735 = vsel %vm145, %v730, 0
    %v738 = vsel %vm270, %v733, 0
    %740 = vmatprep.subr.bf16.mxu0 0
    %741 = vmatpush1.bf16.msra.mxu0 0
    %742 = vmatprep.subr.bf16.mxu0 0
    %743 = vmatpush1.bf16.msra.mxu0 0
    %744 = vmatprep.subr.bf16.mxu0 0
    %745 = vmatpush1.bf16.msra.mxu0 0
    %746 = vmatprep.subr.bf16.mxu0 0
    %747 = vmatpush1.bf16.msra.mxu0 0
    %748 = vmatprep.subr.bf16.mxu0 0
    %749 = vmatpush1.bf16.msra.mxu0 0
    %750 = vmatprep.subr.bf16.mxu0 0
    %751 = vmatpush1.bf16.msra.mxu0 0
    %752 = vmatprep.subr.bf16.mxu0 0
    %753 = vmatpush1.bf16.msra.mxu0 0
    %754 = vmatprep.subr.bf16.mxu0 0
    %755 = vmatpush1.bf16.msra.mxu0 %v738
    %756 = vmatprep.subr.bf16.mxu0 0
    %757 = vmatpush2.bf16.msra.mxu0 0
    %758 = vmatprep.subr.bf16.mxu0 0
    %759 = vmatpush2.bf16.msra.mxu0 0
    %760 = vmatprep.subr.bf16.mxu0 0
    %761 = vmatpush2.bf16.msra.mxu0 0
    %762 = vmatprep.subr.bf16.mxu0 0
    %763 = vmatpush2.bf16.msra.mxu0 0
    %764 = vmatprep.subr.bf16.mxu0 0
    %765 = vmatpush2.bf16.msra.mxu0 0
    %766 = vmatprep.subr.bf16.mxu0 0
    %767 = vmatpush2.bf16.msra.mxu0 0
    %768 = vmatprep.subr.bf16.mxu0 0
    %769 = vmatpush2.bf16.msra.mxu0 0
    %770 = vmatprep.subr.bf16.mxu0 0
    %771 = vmatpush2.bf16.msra.mxu0 0
    %772 = vmatprep.mubr.bf16.mxu0 0
    %773 = vmatmul.mubr.bf16.gmra.mxu0 %v735
    %v774 = vpop.f32.mrf.mxu0
    %v775 = vadd.f32 0.0, %v774
    %v776 = vpop.f32.mrf.mxu0
    %v777 = vpop.f32.mrf.mxu0
    %v778 = vpop.f32.mrf.mxu0
    %779 = vdwg.mxu0
    %780 = vrot.lane.b32.xlu0 %v141, 48
    %v781 = vpop.permute.xlu0 %780
    %v783 = vsel %vm145, %v731, 0
    %v786 = vsel %vm270, %v781, 0
    %788 = vmatprep.subr.bf16.mxu0 0
    %789 = vmatpush1.bf16.msra.mxu0 0
    %790 = vmatprep.subr.bf16.mxu0 0
    %791 = vmatpush1.bf16.msra.mxu0 0
    %792 = vmatprep.subr.bf16.mxu0 0
    %793 = vmatpush1.bf16.msra.mxu0 0
    %794 = vmatprep.subr.bf16.mxu0 0
    %795 = vmatpush1.bf16.msra.mxu0 0
    %796 = vmatprep.subr.bf16.mxu0 0
    %797 = vmatpush1.bf16.msra.mxu0 0
    %798 = vmatprep.subr.bf16.mxu0 0
    %799 = vmatpush1.bf16.msra.mxu0 0
    %800 = vmatprep.subr.bf16.mxu0 0
    %801 = vmatpush1.bf16.msra.mxu0 0
    %802 = vmatprep.subr.bf16.mxu0 0
    %803 = vmatpush1.bf16.msra.mxu0 %v786
    %804 = vmatprep.subr.bf16.mxu0 0
    %805 = vmatpush2.bf16.msra.mxu0 0
    %806 = vmatprep.subr.bf16.mxu0 0
    %807 = vmatpush2.bf16.msra.mxu0 0
    %808 = vmatprep.subr.bf16.mxu0 0
    %809 = vmatpush2.bf16.msra.mxu0 0
    %810 = vmatprep.subr.bf16.mxu0 0
    %811 = vmatpush2.bf16.msra.mxu0 0
    %812 = vmatprep.subr.bf16.mxu0 0
    %813 = vmatpush2.bf16.msra.mxu0 0
    %814 = vmatprep.subr.bf16.mxu0 0
    %815 = vmatpush2.bf16.msra.mxu0 0
    %816 = vmatprep.subr.bf16.mxu0 0
    %817 = vmatpush2.bf16.msra.mxu0 0
    %818 = vmatprep.subr.bf16.mxu0 0
    %819 = vmatpush2.bf16.msra.mxu0 0
    %820 = vmatprep.mubr.bf16.mxu0 0
    %821 = vmatmul.mubr.bf16.gmra.mxu0 %v783
    %v822 = vpop.f32.mrf.mxu0
    %v823 = vadd.f32 0.0, %v822
    %v824 = vpop.f32.mrf.mxu0
    %v825 = vpop.f32.mrf.mxu0
    %v826 = vpop.f32.mrf.mxu0
    %827 = vdwg.mxu0
    %v828 = vpack.c.bf16 %v823, %v775
    %v830 = vunpack.c.l.b16 %v828
    %v831 = vunpack.c.h.b16 %v828
    %v832 = vpack.c.b16 %v830, %v830
    %v833 = vpack.c.b16 %v831, %v831
    %834 = vrot.lane.b32.xlu0 %v832, 16
    %v835 = vpop.permute.xlu0 %834
    %836 = vrot.lane.b32.xlu0 %v833, 16
    %v837 = vpop.permute.xlu0 %836
    %vm840 = vcmask 191616
    %841 = vst.msk [vmem:[#allocation2] sm:$0xf] %vm840, %v835
    %842 = vst.msk [vmem:[#allocation2 + $0x4] sm:$0xf] %vm840, %v837
    %843 = vrot.lane.b32.xlu0 %v140, 104
    %v844 = vpop.permute.xlu0 %843
    %845 = vrot.lane.b32.xlu0 %v140, 72
    %v846 = vpop.permute.xlu0 %845
    %v848 = vsel %vm145, %v844, 0
    %v851 = vsel %vm145, %v846, 0
    %853 = vmatprep.subr.bf16.mxu0 0
    %854 = vmatpush1.bf16.xpose.msra.mxu0 0
    %855 = vmatprep.subr.bf16.mxu0 0
    %856 = vmatpush1.bf16.xpose.msra.mxu0 0
    %857 = vmatprep.subr.bf16.mxu0 0
    %858 = vmatpush1.bf16.xpose.msra.mxu0 0
    %859 = vmatprep.subr.bf16.mxu0 0
    %860 = vmatpush1.bf16.xpose.msra.mxu0 0
    %861 = vmatprep.subr.bf16.mxu0 0
    %862 = vmatpush1.bf16.xpose.msra.mxu0 0
    %863 = vmatprep.subr.bf16.mxu0 0
    %864 = vmatpush1.bf16.xpose.msra.mxu0 0
    %865 = vmatprep.subr.bf16.mxu0 0
    %866 = vmatpush1.bf16.xpose.msra.mxu0 0
    %867 = vmatprep.subr.bf16.mxu0 0
    %868 = vmatpush1.bf16.xpose.msra.mxu0 %v851
    %869 = vmatprep.subr.bf16.mxu0 0
    %870 = vmatpush2.bf16.xpose.msra.mxu0 0
    %871 = vmatprep.subr.bf16.mxu0 0
    %872 = vmatpush2.bf16.xpose.msra.mxu0 0
    %873 = vmatprep.subr.bf16.mxu0 0
    %874 = vmatpush2.bf16.xpose.msra.mxu0 0
    %875 = vmatprep.subr.bf16.mxu0 0
    %876 = vmatpush2.bf16.xpose.msra.mxu0 0
    %877 = vmatprep.subr.bf16.mxu0 0
    %878 = vmatpush2.bf16.xpose.msra.mxu0 0
    %879 = vmatprep.subr.bf16.mxu0 0
    %880 = vmatpush2.bf16.xpose.msra.mxu0 0
    %881 = vmatprep.subr.bf16.mxu0 0
    %882 = vmatpush2.bf16.xpose.msra.mxu0 0
    %883 = vmatprep.subr.bf16.mxu0 0
    %884 = vmatpush2.bf16.xpose.msra.mxu0 0
    %885 = vmatprep.mubr.bf16.mxu0 0
    %886 = vmatmul.mubr.bf16.gmra.mxu0 %v848
    %v887 = vpop.f32.mrf.mxu0
    %v888 = vadd.f32 0.0, %v887
    %v889 = vpop.f32.mrf.mxu0
    %v890 = vpop.f32.mrf.mxu0
    %v891 = vpop.f32.mrf.mxu0
    %892 = vdwg.mxu0
    %893 = vrot.lane.b32.xlu0 %v141, 104
    %v894 = vpop.permute.xlu0 %893
    %895 = vrot.lane.b32.xlu0 %v141, 72
    %v896 = vpop.permute.xlu0 %895
    %v898 = vsel %vm145, %v894, 0
    %v901 = vsel %vm145, %v896, 0
    %903 = vmatprep.subr.bf16.mxu0 0
    %904 = vmatpush1.bf16.xpose.msra.mxu0 0
    %905 = vmatprep.subr.bf16.mxu0 0
    %906 = vmatpush1.bf16.xpose.msra.mxu0 0
    %907 = vmatprep.subr.bf16.mxu0 0
    %908 = vmatpush1.bf16.xpose.msra.mxu0 0
    %909 = vmatprep.subr.bf16.mxu0 0
    %910 = vmatpush1.bf16.xpose.msra.mxu0 0
    %911 = vmatprep.subr.bf16.mxu0 0
    %912 = vmatpush1.bf16.xpose.msra.mxu0 0
    %913 = vmatprep.subr.bf16.mxu0 0
    %914 = vmatpush1.bf16.xpose.msra.mxu0 0
    %915 = vmatprep.subr.bf16.mxu0 0
    %916 = vmatpush1.bf16.xpose.msra.mxu0 0
    %917 = vmatprep.subr.bf16.mxu0 0
    %918 = vmatpush1.bf16.xpose.msra.mxu0 %v901
    %919 = vmatprep.subr.bf16.mxu0 0
    %920 = vmatpush2.bf16.xpose.msra.mxu0 0
    %921 = vmatprep.subr.bf16.mxu0 0
    %922 = vmatpush2.bf16.xpose.msra.mxu0 0
    %923 = vmatprep.subr.bf16.mxu0 0
    %924 = vmatpush2.bf16.xpose.msra.mxu0 0
    %925 = vmatprep.subr.bf16.mxu0 0
    %926 = vmatpush2.bf16.xpose.msra.mxu0 0
    %927 = vmatprep.subr.bf16.mxu0 0
    %928 = vmatpush2.bf16.xpose.msra.mxu0 0
    %929 = vmatprep.subr.bf16.mxu0 0
    %930 = vmatpush2.bf16.xpose.msra.mxu0 0
    %931 = vmatprep.subr.bf16.mxu0 0
    %932 = vmatpush2.bf16.xpose.msra.mxu0 0
    %933 = vmatprep.subr.bf16.mxu0 0
    %934 = vmatpush2.bf16.xpose.msra.mxu0 0
    %935 = vmatprep.mubr.bf16.mxu0 0
    %936 = vmatmul.mubr.bf16.gmra.mxu0 %v898
    %v937 = vpop.f32.mrf.mxu0
    %v938 = vadd.f32 0.0, %v937
    %v939 = vpop.f32.mrf.mxu0
    %v940 = vpop.f32.mrf.mxu0
    %v941 = vpop.f32.mrf.mxu0
    %942 = vdwg.mxu0
    %v943 = vsel %vm145, %v888, -inf
    %944 = vmax.xlane.f32.xlu0 %v943
    %v945 = vpop.xlane.xlu0 %944
    %v946 = vsel %vm145, %v938, -inf
    %947 = vmax.xlane.f32.xlu0 %v946
    %v948 = vpop.xlane.xlu0 %947
    %v949 = vsub.f32 %v888, %v945
    %v950 = vsub.f32 %v938, %v948
    %v951 = vmul.f32 %v949, 1.442695
    %v952 = vpow.pop %v951
    %v953 = vmul.f32 %v950, 1.442695
    %v954 = vpow.pop %v953
    %v955 = vsel %vm145, %v952, 0.0
    %956 = vadd.xlane.f32.xlu0 %v955
    %v957 = vpop.xlane.xlu0 %956
    %v958 = vsel %vm145, %v954, 0.0
    %959 = vadd.xlane.f32.xlu0 %v958
    %v960 = vpop.xlane.xlu0 %959
    %v961 = vrcp.pop %v957
    %v962 = vrcp.pop %v960
    %v963 = vmul.f32 %v952, %v961
    %v964 = vmul.f32 %v954, %v962
    %v965 = vpack.c.bf16 %v963, %v963
    %v966 = vpack.c.bf16 %v964, %v964
    %967 = vrot.lane.b32.xlu0 %v140, 40
    %v968 = vpop.permute.xlu0 %967
    %v970 = vsel %vm145, %v965, 0
    %v973 = vsel %vm270, %v968, 0
    %975 = vmatprep.subr.bf16.mxu0 0
    %976 = vmatpush1.bf16.msra.mxu0 0
    %977 = vmatprep.subr.bf16.mxu0 0
    %978 = vmatpush1.bf16.msra.mxu0 0
    %979 = vmatprep.subr.bf16.mxu0 0
    %980 = vmatpush1.bf16.msra.mxu0 0
    %981 = vmatprep.subr.bf16.mxu0 0
    %982 = vmatpush1.bf16.msra.mxu0 0
    %983 = vmatprep.subr.bf16.mxu0 0
    %984 = vmatpush1.bf16.msra.mxu0 0
    %985 = vmatprep.subr.bf16.mxu0 0
    %986 = vmatpush1.bf16.msra.mxu0 0
    %987 = vmatprep.subr.bf16.mxu0 0
    %988 = vmatpush1.bf16.msra.mxu0 0
    %989 = vmatprep.subr.bf16.mxu0 0
    %990 = vmatpush1.bf16.msra.mxu0 %v973
    %991 = vmatprep.subr.bf16.mxu0 0
    %992 = vmatpush2.bf16.msra.mxu0 0
    %993 = vmatprep.subr.bf16.mxu0 0
    %994 = vmatpush2.bf16.msra.mxu0 0
    %995 = vmatprep.subr.bf16.mxu0 0
    %996 = vmatpush2.bf16.msra.mxu0 0
    %997 = vmatprep.subr.bf16.mxu0 0
    %998 = vmatpush2.bf16.msra.mxu0 0
    %999 = vmatprep.subr.bf16.mxu0 0
    %1000 = vmatpush2.bf16.msra.mxu0 0
    %1001 = vmatprep.subr.bf16.mxu0 0
    %1002 = vmatpush2.bf16.msra.mxu0 0
    %1003 = vmatprep.subr.bf16.mxu0 0
    %1004 = vmatpush2.bf16.msra.mxu0 0
    %1005 = vmatprep.subr.bf16.mxu0 0
    %1006 = vmatpush2.bf16.msra.mxu0 0
    %1007 = vmatprep.mubr.bf16.mxu0 0
    %1008 = vmatmul.mubr.bf16.gmra.mxu0 %v970
    %v1009 = vpop.f32.mrf.mxu0
    %v1010 = vadd.f32 0.0, %v1009
    %v1011 = vpop.f32.mrf.mxu0
    %v1012 = vpop.f32.mrf.mxu0
    %v1013 = vpop.f32.mrf.mxu0
    %1014 = vdwg.mxu0
    %1015 = vrot.lane.b32.xlu0 %v141, 40
    %v1016 = vpop.permute.xlu0 %1015
    %v1018 = vsel %vm145, %v966, 0
    %v1021 = vsel %vm270, %v1016, 0
    %1023 = vmatprep.subr.bf16.mxu0 0
    %1024 = vmatpush1.bf16.msra.mxu0 0
    %1025 = vmatprep.subr.bf16.mxu0 0
    %1026 = vmatpush1.bf16.msra.mxu0 0
    %1027 = vmatprep.subr.bf16.mxu0 0
    %1028 = vmatpush1.bf16.msra.mxu0 0
    %1029 = vmatprep.subr.bf16.mxu0 0
    %1030 = vmatpush1.bf16.msra.mxu0 0
    %1031 = vmatprep.subr.bf16.mxu0 0
    %1032 = vmatpush1.bf16.msra.mxu0 0
    %1033 = vmatprep.subr.bf16.mxu0 0
    %1034 = vmatpush1.bf16.msra.mxu0 0
    %1035 = vmatprep.subr.bf16.mxu0 0
    %1036 = vmatpush1.bf16.msra.mxu0 0
    %1037 = vmatprep.subr.bf16.mxu0 0
    %1038 = vmatpush1.bf16.msra.mxu0 %v1021
    %1039 = vmatprep.subr.bf16.mxu0 0
    %1040 = vmatpush2.bf16.msra.mxu0 0
    %1041 = vmatprep.subr.bf16.mxu0 0
    %1042 = vmatpush2.bf16.msra.mxu0 0
    %1043 = vmatprep.subr.bf16.mxu0 0
    %1044 = vmatpush2.bf16.msra.mxu0 0
    %1045 = vmatprep.subr.bf16.mxu0 0
    %1046 = vmatpush2.bf16.msra.mxu0 0
    %1047 = vmatprep.subr.bf16.mxu0 0
    %1048 = vmatpush2.bf16.msra.mxu0 0
    %1049 = vmatprep.subr.bf16.mxu0 0
    %1050 = vmatpush2.bf16.msra.mxu0 0
    %1051 = vmatprep.subr.bf16.mxu0 0
    %1052 = vmatpush2.bf16.msra.mxu0 0
    %1053 = vmatprep.subr.bf16.mxu0 0
    %1054 = vmatpush2.bf16.msra.mxu0 0
    %1055 = vmatprep.mubr.bf16.mxu0 0
    %1056 = vmatmul.mubr.bf16.gmra.mxu0 %v1018
    %v1057 = vpop.f32.mrf.mxu0
    %v1058 = vadd.f32 0.0, %v1057
    %v1059 = vpop.f32.mrf.mxu0
    %v1060 = vpop.f32.mrf.mxu0
    %v1061 = vpop.f32.mrf.mxu0
    %1062 = vdwg.mxu0
    %v1063 = vpack.c.bf16 %v1058, %v1010
    %v1065 = vunpack.c.l.b16 %v1063
    %v1066 = vunpack.c.h.b16 %v1063
    %v1067 = vpack.c.b16 %v1065, %v1065
    %v1068 = vpack.c.b16 %v1066, %v1066
    %1069 = vrot.lane.b32.xlu0 %v1067, 24
    %v1070 = vpop.permute.xlu0 %1069
    %1071 = vrot.lane.b32.xlu0 %v1068, 24
    %v1072 = vpop.permute.xlu0 %1071
    %vm1075 = vcmask 257216
    %1076 = vst.msk [vmem:[#allocation2] sm:$0xf] %vm1075, %v1070
    %1077 = vst.msk [vmem:[#allocation2 + $0x4] sm:$0xf] %vm1075, %v1072
    %v1078 = vld [vmem:[#allocation2] sm:$0xf]
    %v1079 = vld [vmem:[#allocation2 + $0x4] sm:$0xf]
    %v1080 = vlaneseq
    %v1081 = vshrl.u32 %v1080, 7
    %v1082 = vsub.s32 1, %v1081
    %v1083 = vrot.slane %v57, %v1082
    %v1086 = vunpack.c.l.b16 %v1078
    %v1087 = vunpack.c.l.b16 %v1079
    %v1088 = vpack.c.b16 %v1087, %v1086
    %v1093 = vunpack.c.l.b16 %v62
    %v1094 = vunpack.c.l.b16 %v63
    %v1095 = vunpack.c.l.b16 %v64
    %v1096 = vunpack.c.l.b16 %v65
    %v1097 = vpack.c.b16 %v1094, %v1093
    %v1098 = vpack.c.b16 %v1096, %v1095
    %v1102 = vsel %vm95, %v1088, 0
    %1104 = vmatprep.subr.bf16.mxu0 0
    %1105 = vmatpush1.bf16.msra.mxu0 0
    %1106 = vmatprep.subr.bf16.mxu0 0
    %1107 = vmatpush1.bf16.msra.mxu0 0
    %1108 = vmatprep.subr.bf16.mxu0 0
    %1109 = vmatpush1.bf16.msra.mxu0 0
    %1110 = vmatprep.subr.bf16.mxu0 0
    %1111 = vmatpush1.bf16.msra.mxu0 0
    %1112 = vmatprep.subr.bf16.mxu0 0
    %1113 = vmatpush1.bf16.msra.mxu0 0
    %1114 = vmatprep.subr.bf16.mxu0 0
    %1115 = vmatpush1.bf16.msra.mxu0 0
    %1116 = vmatprep.subr.bf16.mxu0 0
    %1117 = vmatpush1.bf16.msra.mxu0 %v1098
    %1118 = vmatprep.subr.bf16.mxu0 0
    %1119 = vmatpush1.bf16.msra.mxu0 %v1097
    %1120 = vmatprep.subr.bf16.mxu0 0
    %1121 = vmatpush2.bf16.msra.mxu0 0
    %1122 = vmatprep.subr.bf16.mxu0 0
    %1123 = vmatpush2.bf16.msra.mxu0 0
    %1124 = vmatprep.subr.bf16.mxu0 0
    %1125 = vmatpush2.bf16.msra.mxu0 0
    %1126 = vmatprep.subr.bf16.mxu0 0
    %1127 = vmatpush2.bf16.msra.mxu0 0
    %1128 = vmatprep.subr.bf16.mxu0 0
    %1129 = vmatpush2.bf16.msra.mxu0 0
    %1130 = vmatprep.subr.bf16.mxu0 0
    %1131 = vmatpush2.bf16.msra.mxu0 0
    %1132 = vmatprep.subr.bf16.mxu0 0
    %1133 = vmatpush2.bf16.msra.mxu0 0
    %1134 = vmatprep.subr.bf16.mxu0 0
    %1135 = vmatpush2.bf16.msra.mxu0 0
    %1136 = vmatprep.mubr.bf16.mxu0 0
    %1137 = vmatmul.mubr.bf16.gmra.mxu0 %v1102
    %v1138 = vpop.f32.mrf.mxu0
    %v1139 = vadd.f32 %v1083, %v1138
    %v1140 = vpop.f32.mrf.mxu0
    %v1141 = vpop.f32.mrf.mxu0
    %v1142 = vadd.f32 %v1083, %v1141
    %v1143 = vpop.f32.mrf.mxu0
    %1144 = vdwg.mxu0
    %v1145 = vadd.f32 %v55, %v1139
    %v1146 = vadd.f32 %v56, %v1142
    %v1147 = vsel %vm95, %v1145, 0.0
    %1148 = vadd.xlane.f32.xlu0 %v1147
    %v1149 = vpop.xlane.xlu0 %1148
    %v1150 = vsel %vm95, %v1146, 0.0
    %1151 = vadd.xlane.f32.xlu0 %v1150
    %v1152 = vpop.xlane.xlu0 %1151
    %v1153 = vmul.f32 %v1149, 0.03125
    %v1154 = vmul.f32 %v1152, 0.03125
    %v1155 = vmul.f32 %v1145, %v1145
    %v1156 = vmul.f32 %v1146, %v1146
    %v1157 = vsel %vm95, %v1155, 0.0
    %1158 = vadd.xlane.f32.xlu0 %v1157
    %v1159 = vpop.xlane.xlu0 %1158
    %v1160 = vsel %vm95, %v1156, 0.0
    %1161 = vadd.xlane.f32.xlu0 %v1160
    %v1162 = vpop.xlane.xlu0 %1161
    %v1163 = vmul.f32 %v1159, 0.03125
    %v1164 = vmul.f32 %v1162, 0.03125
    %v1165 = vmul.f32 %v1153, %v1153
    %v1166 = vmul.f32 %v1154, %v1154
    %v1167 = vsub.f32 %v1163, %v1165
    %v1168 = vsub.f32 %v1164, %v1166
    %v1169 = vsub.f32 %v1145, %v1153
    %v1170 = vsub.f32 %v1146, %v1154
    %v1171 = vadd.f32 %v1167, 1e-05
    %v1172 = vadd.f32 %v1168, 1e-05
    %v1173 = vrsqrt.pop %v1171
    %v1174 = vrsqrt.pop %v1172
    %v1175 = vmul.f32 %v1169, %v1173
    %v1176 = vmul.f32 %v1170, %v1174
    %v1177 = vlaneseq
    %v1178 = vshrl.u32 %v1177, 7
    %v1179 = vsub.s32 2, %v1178
    %v1180 = vrot.slane %v57, %v1179
    %v1181 = vmul.f32 %v1175, %v1180
    %v1182 = vmul.f32 %v1176, %v1180
    %v1183 = vlaneseq
    %v1184 = vshrl.u32 %v1183, 7
    %v1185 = vsub.s32 3, %v1184
    %v1186 = vrot.slane %v57, %v1185
    %v1187 = vadd.f32 %v1181, %v1186
    %v1188 = vadd.f32 %v1182, %v1186
    %v1189 = vpack.c.bf16 %v1188, %v1187
    %v1190 = vlaneseq
    %v1191 = vshrl.u32 %v1190, 7
    %v1192 = vsub.s32 4, %v1191
    %v1193 = vrot.slane %v57, %v1192
    %v1198 = vunpack.c.l.b16 %v66
    %v1199 = vunpack.c.l.b16 %v67
    %v1200 = vunpack.c.l.b16 %v68
    %v1201 = vunpack.c.l.b16 %v69
    %v1202 = vpack.c.b16 %v1199, %v1198
    %v1203 = vpack.c.b16 %v1201, %v1200
    %v1207 = vsel %vm95, %v1189, 0
    %1209 = vmatprep.subr.bf16.mxu0 0
    %1210 = vmatpush1.bf16.msra.mxu0 0
    %1211 = vmatprep.subr.bf16.mxu0 0
    %1212 = vmatpush1.bf16.msra.mxu0 0
    %1213 = vmatprep.subr.bf16.mxu0 0
    %1214 = vmatpush1.bf16.msra.mxu0 0
    %1215 = vmatprep.subr.bf16.mxu0 0
    %1216 = vmatpush1.bf16.msra.mxu0 0
    %1217 = vmatprep.subr.bf16.mxu0 0
    %1218 = vmatpush1.bf16.msra.mxu0 0
    %1219 = vmatprep.subr.bf16.mxu0 0
    %1220 = vmatpush1.bf16.msra.mxu0 0
    %1221 = vmatprep.subr.bf16.mxu0 0
    %1222 = vmatpush1.bf16.msra.mxu0 %v1203
    %1223 = vmatprep.subr.bf16.mxu0 0
    %1224 = vmatpush1.bf16.msra.mxu0 %v1202
    %1225 = vmatprep.subr.bf16.mxu0 0
    %1226 = vmatpush2.bf16.msra.mxu0 0
    %1227 = vmatprep.subr.bf16.mxu0 0
    %1228 = vmatpush2.bf16.msra.mxu0 0
    %1229 = vmatprep.subr.bf16.mxu0 0
    %1230 = vmatpush2.bf16.msra.mxu0 0
    %1231 = vmatprep.subr.bf16.mxu0 0
    %1232 = vmatpush2.bf16.msra.mxu0 0
    %1233 = vmatprep.subr.bf16.mxu0 0
    %1234 = vmatpush2.bf16.msra.mxu0 0
    %1235 = vmatprep.subr.bf16.mxu0 0
    %1236 = vmatpush2.bf16.msra.mxu0 0
    %1237 = vmatprep.subr.bf16.mxu0 0
    %1238 = vmatpush2.bf16.msra.mxu0 0
    %1239 = vmatprep.subr.bf16.mxu0 0
    %1240 = vmatpush2.bf16.msra.mxu0 0
    %1241 = vmatprep.mubr.bf16.mxu0 0
    %1242 = vmatmul.mubr.bf16.gmra.mxu0 %v1207
    %v1243 = vpop.f32.mrf.mxu0
    %v1244 = vadd.f32 %v1193, %v1243
    %v1245 = vpop.f32.mrf.mxu0
    %v1246 = vpop.f32.mrf.mxu0
    %v1247 = vadd.f32 %v1193, %v1246
    %v1248 = vpop.f32.mrf.mxu0
    %1249 = vdwg.mxu0
    %v1250 = vmax.f32 %v1244, 0.0
    %v1251 = vmax.f32 %v1247, 0.0
    %v1252 = vpack.c.bf16 %v1251, %v1250
    %v1253 = vlaneseq
    %v1254 = vshrl.u32 %v1253, 7
    %v1255 = vsub.s32 5, %v1254
    %v1256 = vrot.slane %v57, %v1255
    %v1265 = vunpack.c.l.b16 %v70
    %v1266 = vunpack.c.l.b16 %v71
    %v1267 = vunpack.c.l.b16 %v72
    %v1268 = vunpack.c.l.b16 %v73
    %v1269 = vunpack.c.l.b16 %v74
    %v1270 = vunpack.c.l.b16 %v75
    %v1271 = vunpack.c.l.b16 %v76
    %v1272 = vunpack.c.l.b16 %v77
    %v1273 = vpack.c.b16 %v1266, %v1265
    %v1274 = vpack.c.b16 %v1268, %v1267
    %v1275 = vpack.c.b16 %v1270, %v1269
    %v1276 = vpack.c.b16 %v1272, %v1271
    %vm1281 = vcmask 523264
    %v1283 = vsel %vm1281, %v1252, 0
    %1285 = vmatprep.subr.bf16.mxu0 0
    %1286 = vmatpush1.bf16.msra.mxu0 0
    %1287 = vmatprep.subr.bf16.mxu0 0
    %1288 = vmatpush1.bf16.msra.mxu0 0
    %1289 = vmatprep.subr.bf16.mxu0 0
    %1290 = vmatpush1.bf16.msra.mxu0 0
    %1291 = vmatprep.subr.bf16.mxu0 0
    %1292 = vmatpush1.bf16.msra.mxu0 0
    %1293 = vmatprep.subr.bf16.mxu0 0
    %1294 = vmatpush1.bf16.msra.mxu0 %v1276
    %1295 = vmatprep.subr.bf16.mxu0 0
    %1296 = vmatpush1.bf16.msra.mxu0 %v1275
    %1297 = vmatprep.subr.bf16.mxu0 0
    %1298 = vmatpush1.bf16.msra.mxu0 %v1274
    %1299 = vmatprep.subr.bf16.mxu0 0
    %1300 = vmatpush1.bf16.msra.mxu0 %v1273
    %1301 = vmatprep.subr.bf16.mxu0 0
    %1302 = vmatpush2.bf16.msra.mxu0 0
    %1303 = vmatprep.subr.bf16.mxu0 0
    %1304 = vmatpush2.bf16.msra.mxu0 0
    %1305 = vmatprep.subr.bf16.mxu0 0
    %1306 = vmatpush2.bf16.msra.mxu0 0
    %1307 = vmatprep.subr.bf16.mxu0 0
    %1308 = vmatpush2.bf16.msra.mxu0 0
    %1309 = vmatprep.subr.bf16.mxu0 0
    %1310 = vmatpush2.bf16.msra.mxu0 0
    %1311 = vmatprep.subr.bf16.mxu0 0
    %1312 = vmatpush2.bf16.msra.mxu0 0
    %1313 = vmatprep.subr.bf16.mxu0 0
    %1314 = vmatpush2.bf16.msra.mxu0 0
    %1315 = vmatprep.subr.bf16.mxu0 0
    %1316 = vmatpush2.bf16.msra.mxu0 0
    %1317 = vmatprep.mubr.bf16.mxu0 0
    %1318 = vmatmul.mubr.bf16.gmra.mxu0 %v1283
    %v1319 = vpop.f32.mrf.mxu0
    %v1320 = vadd.f32 %v1256, %v1319
    %v1321 = vpop.f32.mrf.mxu0
    %v1322 = vpop.f32.mrf.mxu0
    %v1323 = vadd.f32 %v1256, %v1322
    %v1324 = vpop.f32.mrf.mxu0
    %1325 = vdwg.mxu0
    %v1326 = vadd.f32 %v1187, %v1320
    %v1327 = vadd.f32 %v1188, %v1323
    %v1328 = vsel %vm95, %v1326, 0.0
    %1329 = vadd.xlane.f32.xlu0 %v1328
    %v1330 = vpop.xlane.xlu0 %1329
    %v1331 = vsel %vm95, %v1327, 0.0
    %1332 = vadd.xlane.f32.xlu0 %v1331
    %v1333 = vpop.xlane.xlu0 %1332
    %v1334 = vmul.f32 %v1330, 0.03125
    %v1335 = vmul.f32 %v1333, 0.03125
    %v1336 = vmul.f32 %v1326, %v1326
    %v1337 = vmul.f32 %v1327, %v1327
    %v1338 = vsel %vm95, %v1336, 0.0
    %1339 = vadd.xlane.f32.xlu0 %v1338
    %v1340 = vpop.xlane.xlu0 %1339
    %v1341 = vsel %vm95, %v1337, 0.0
    %1342 = vadd.xlane.f32.xlu0 %v1341
    %v1343 = vpop.xlane.xlu0 %1342
    %v1344 = vmul.f32 %v1340, 0.03125
    %v1345 = vmul.f32 %v1343, 0.03125
    %v1346 = vmul.f32 %v1334, %v1334
    %v1347 = vmul.f32 %v1335, %v1335
    %v1348 = vsub.f32 %v1344, %v1346
    %v1349 = vsub.f32 %v1345, %v1347
    %v1350 = vsub.f32 %v1326, %v1334
    %v1351 = vsub.f32 %v1327, %v1335
    %v1352 = vadd.f32 %v1348, 1e-05
    %v1353 = vadd.f32 %v1349, 1e-05
    %v1354 = vrsqrt.pop %v1352
    %v1355 = vrsqrt.pop %v1353
    %v1356 = vmul.f32 %v1350, %v1354
    %v1357 = vmul.f32 %v1351, %v1355
    %v1358 = vlaneseq
    %v1359 = vshrl.u32 %v1358, 7
    %v1360 = vsub.s32 6, %v1359
    %v1361 = vrot.slane %v57, %v1360
    %v1362 = vmul.f32 %v1356, %v1361
    %v1363 = vmul.f32 %v1357, %v1361
    %v1364 = vlaneseq
    %v1365 = vshrl.u32 %v1364, 7
    %v1366 = vsub.s32 7, %v1365
    %v1367 = vrot.slane %v57, %v1366
    %v1368 = vadd.f32 %v1362, %v1367
    %v1369 = vadd.f32 %v1363, %v1367
    %1370 = vst.msk [vmem:[#allocation9] sm:$0xff] %vm95, %v1368
    %1371 = vst.msk [vmem:[#allocation9 + $0x8] sm:$0xff] %vm95, %v1369
    // Predicated region
    $region26: #{tpu_custom_call.1} parent=1 // pred_check
      _
    $region27: #{tpu_custom_call.1} parent=1 // pred_check_branch
      %1373 = sbr.rel (0) target = $region29
    $region28: #{tpu_custom_call.1} parent=1 // pred_region
      %s1375 = ssub.s32 256, 256
      %1376 = vsyncadd [#allocation5], %s1375
      %s1377 = sshll.u32 [#allocation9], 4
      %s1378 = int_to_ptr.vmem [resolvable:$true] %s1377
      %1383 = dma.vmem_to_hbm [thread:$0]  %s1378, 256, %s3, [#allocation5], 128, 128, 8
    $region29: #{tpu_custom_call.1} parent=1 // pred_fallthru
      _
    // Predicated region
    $region30: #{tpu_custom_call.1} parent=1 // pred_check
      _
    $region31: #{tpu_custom_call.1} parent=1 // pred_check_branch
      %1385 = sbr.rel (0) target = $region33
    $region32: #{tpu_custom_call.1} parent=1 // pred_region
      %1386 = dma.done [#allocation5], 256
    $region33: #{tpu_custom_call.1} parent=1 // pred_fallthru
      _
    %1387 = vsyncpa [#allocation4], 1
    %1388 = vsyncpa [#allocation7], 1
    %1389 = vsyncpa [#allocation5], 1

</llo_original>
